<compile_context>
chip_gen: v7x
topology: tpu7x:2x2x1
jax: 0.10.0
libtpu: 0.0.40
codegen_flags: <defaults>
</compile_context>

<pallas_src>
import functools

import jax
import jax.numpy as jnp
from jax.experimental import pallas as pl
from jax.experimental.pallas import tpu as pltpu

EPS = 1e-5


# ----------------------------- Pallas kernel -----------------------------
def _res_block_kernel(x_ref,                    # (NB, B*W*Cin)       f32 lane-dense rows
                      m1_ref,                   # (3*B*W*Cin,  B*W*Cmid) bf16 stacked band
                      m2_ref,                   # (3*B*W*Cmid, B*W*Cout) bf16 stacked band
                      mr_ref,                   # (B*W*Cin,    B*W*Cout) bf16 1x1 band
                      g1_ref, be1_ref,          # (1, Cmid) f32 bn1 gamma/beta
                      g2_ref, be2_ref,          # (1, Cout) f32 bn2 gamma/beta
                      r1_ref, c1_ref,           # (B*W*Cmid, Cmid), (Cmid, B*W*Cmid) f32
                      r2_ref, c2_ref,           # (B*W*Cout, Cout), (Cout, B*W*Cout) f32
                      out_ref,                  # (NB, B*W*Cout) f32
                      *, nbh, inv_cnt):
    f32 = jnp.float32
    x = x_ref[...]
    nb = x.shape[0]

    # image-boundary masks for the vertical taps (rows are (image, row-block) blocks)
    rr = jax.lax.broadcasted_iota(jnp.int32, (nb, 1), 0) % nbh
    m_prev = (rr > 0).astype(f32)          # zero rows that would read above the image
    m_next = (rr < nbh - 1).astype(f32)    # zero rows that would read below the image

    def mmw(a, w_ref):
        # conv matmuls: bf16 MXU operands, f32 accumulate
        return jnp.dot(a.astype(w_ref.dtype), w_ref[...], preferred_element_type=f32)

    def mmf(a, b_ref):
        # tiny BN-stat matmuls stay f32
        return jnp.dot(a, b_ref[...], preferred_element_type=f32)

    def taps(a):
        # vertical taps via sublane rolls (XLU) + boundary masks (VPU); one lane-aligned
        # concat so each 3x3 conv becomes a single fused MXU matmul with K = 3*L.
        prev_a = pltpu.roll(a, shift=1, axis=0) * m_prev        # prev_a[q] = a[q-1]
        next_a = pltpu.roll(a, shift=nb - 1, axis=0) * m_next   # next_a[q] = a[q+1]
        return jnp.concatenate([prev_a, a, next_a], axis=-1)

    def stack_rows(rows):
        # stack k one-row vectors into (k, w) without sublane concatenation
        k, w = len(rows), rows[0].shape[-1]
        ridx = jax.lax.broadcasted_iota(jnp.int32, (k, w), 0)
        out = rows[-1]
        for i in range(k - 2, -1, -1):
            out = jnp.where(ridx == i, rows[i], out)
        return out

    def scale_shift(s, gamma, beta):
        # s: (2, C) rows = [per-channel sum, per-channel sumsq]; training-mode BN
        mu = s[0:1, :] * inv_cnt
        var = s[1:2, :] * inv_cnt - mu * mu          # biased variance (PyTorch training BN)
        scale = gamma * jax.lax.rsqrt(var + EPS)
        return scale, beta - mu * scale

    g1, be1 = g1_ref[...], be1_ref[...]
    g2, be2 = g2_ref[...], be2_ref[...]

    # ---- conv1 (3x3) -> bn1 -> ReLU ----
    y1 = mmw(taps(x), m1_ref)                                      # (NB, Lmid)
    st1 = stack_rows([jnp.sum(y1, axis=0, keepdims=True),
                      jnp.sum(y1 * y1, axis=0, keepdims=True)])    # (2, Lmid)
    s1 = mmf(st1, r1_ref)                                          # (2, Cmid)
    sc1, sh1 = scale_shift(s1, g1, be1)
    ss1 = mmf(stack_rows([sc1, sh1]), c1_ref)                      # (2, Lmid)
    h1 = jnp.maximum(y1 * ss1[0:1, :] + ss1[1:2, :], 0.0)

    # ---- conv2 (3x3) and residual 1x1 conv; bn2 stats batched for both paths ----
    y2 = mmw(taps(h1), m2_ref)                                     # (NB, Lout)
    yr = mmw(x, mr_ref)                                            # (NB, Lout)
    st2 = stack_rows([jnp.sum(y2, axis=0, keepdims=True),
                      jnp.sum(y2 * y2, axis=0, keepdims=True),
                      jnp.sum(yr, axis=0, keepdims=True),
                      jnp.sum(yr * yr, axis=0, keepdims=True)])    # (4, Lout)
    s2 = mmf(st2, r2_ref)                                          # (4, Cout)
    sc2m, sh2m = scale_shift(s2[0:2, :], g2, be2)                  # main path bn2
    sc2r, sh2r = scale_shift(s2[2:4, :], g2, be2)                  # residual path bn2
    ss2 = mmf(stack_rows([sc2m, sh2m, sc2r, sh2r]), c2_ref)        # (4, Lout)

    out = (y2 * ss2[0:1, :] + ss2[1:2, :]) + (yr * ss2[2:3, :] + ss2[3:4, :])
    out_ref[...] = jnp.maximum(out, 0.0)


# ----------------------------- parameter packing (hoisted, once per param set) ----------
def _pick_block_rows(H, W, Cout, Cmax):
    """Smallest divisor B of H whose output slab width B*W*Cout is a multiple of 128."""
    for b in range(1, H + 1):
        if H % b:
            continue
        if b * W * Cmax > 1024:          # keep banded weights modest (v7x 64 MiB VMEM)
            break
        if (b * W * Cout) % 128 == 0:
            return b
    return 1


def prepare_res_block(params, x_shape, mxu_dtype=jnp.bfloat16):
    """Build packed kernel operands once per parameter set (not in the per-call path)."""
    N, Cin, H, W = (int(d) for d in x_shape)
    Cmid = int(params["w1"].shape[0])
    Cout = int(params["w2"].shape[0])
    f32 = jnp.float32

    B = _pick_block_rows(H, W, Cout, max(Cin, Cmid, Cout))
    NBH = H // B

    def band3_stacked(w_oihw):
        # banded conv weights: one (B*W*I, B*W*O) matrix per vertical tap offset
        # d in {-1,0,+1}, vertically stacked so the kernel does ONE matmul per conv.
        O, I = int(w_oihw.shape[0]), int(w_oihw.shape[1])
        wt = jnp.transpose(w_oihw, (2, 3, 1, 0)).astype(f32)      # (ky, kx, I, O)
        hbs = []
        for ky in range(3):
            hb = jnp.zeros((W, I, W, O), f32)
            for kx in range(3):
                S = jnp.eye(W, k=1 - kx, dtype=f32)               # S[wi,wo]=1 iff wi==wo+kx-1
                hb = hb + S[:, None, :, None] * wt[ky, kx][None, :, None, :]
            hbs.append(hb)
        mats = []
        for d in (-1, 0, 1):
            m = jnp.zeros((B, W, I, B, W, O), f32)
            for r_in in range(B):
                for r_out in range(B):
                    ky = r_in - r_out + 1 + d * B
                    if 0 <= ky < 3:
                        m = m.at[r_in, :, :, r_out, :, :].set(hbs[ky])
            mats.append(m.reshape(B * W * I, B * W * O))
        return jnp.concatenate(mats, axis=0).astype(mxu_dtype)     # (3*B*W*I, B*W*O)

    m1 = band3_stacked(params["w1"])                               # (3*B*W*Cin,  B*W*Cmid)
    m2 = band3_stacked(params["w2"])                               # (3*B*W*Cmid, B*W*Cout)

    wr_t = jnp.transpose(params["wr"][:, :, 0, 0], (1, 0)).astype(f32)   # (Cin, Cout)
    mr = (jnp.eye(B * W, dtype=f32)[:, None, :, None] * wr_t[None, :, None, :]
          ).reshape(B * W * Cin, B * W * Cout).astype(mxu_dtype)

    # split BN projection: reduce (lane -> channel) and broadcast (channel -> lane)
    r1 = jnp.tile(jnp.eye(Cmid, dtype=f32), (B * W, 1))            # (B*W*Cmid, Cmid)
    c1 = jnp.tile(jnp.eye(Cmid, dtype=f32), (1, B * W))            # (Cmid, B*W*Cmid)
    r2 = jnp.tile(jnp.eye(Cout, dtype=f32), (B * W, 1))            # (B*W*Cout, Cout)
    c2 = jnp.tile(jnp.eye(Cout, dtype=f32), (1, B * W))            # (Cout, B*W*Cout)

    # NOTE: conv biases b1/b2/br are intentionally not packed — they are no-ops under
    # the training-mode BatchNorm that immediately follows each convolution.
    arrays = dict(
        m1=m1, m2=m2, mr=mr,
        g1=params["g1"].astype(f32).reshape(1, Cmid),
        be1=params["be1"].astype(f32).reshape(1, Cmid),
        g2=params["g2"].astype(f32).reshape(1, Cout),
        be2=params["be2"].astype(f32).reshape(1, Cout),
        r1=r1, c1=c1, r2=r2, c2=c2,
    )
    cfg = dict(N=N, Cin=Cin, Cmid=Cmid, Cout=Cout, H=H, W=W, B=B, NBH=NBH,
               inv_cnt=1.0 / float(N * H * W))
    return arrays, cfg


# ----------------------------- wrapper (jitted per-call path) -----------------------------
def res_block_pallas(x_nchw, arrays, cfg):
    N, Cin, H, W = x_nchw.shape
    B, NBH = cfg["B"], cfg["NBH"]
    Cout = cfg["Cout"]
    NB = N * NBH
    f32 = jnp.float32

    # NCHW -> NHWC -> lane-dense row blocks (NB, B*W*Cin); output store is lane-dense too.
    x = jnp.transpose(x_nchw, (0, 2, 3, 1)).astype(f32).reshape(NB, B * W * Cin)

    kernel = functools.partial(_res_block_kernel, nbh=NBH, inv_cnt=cfg["inv_cnt"])
    vmem = pl.BlockSpec(memory_space=pltpu.MemorySpace.VMEM)
    args = (x, arrays["m1"], arrays["m2"], arrays["mr"],
            arrays["g1"], arrays["be1"], arrays["g2"], arrays["be2"],
            arrays["r1"], arrays["c1"], arrays["r2"], arrays["c2"])

    out2d = pl.pallas_call(
        kernel,
        out_shape=jax.ShapeDtypeStruct((NB, B * W * Cout), f32),
        in_specs=[vmem] * len(args),
        out_specs=vmem,
    )(*args)

    out = out2d.reshape(N, H, W, Cout)
    return jnp.transpose(out, (0, 3, 1, 2))


# ----------------------------- pure-JAX reference -----------------------------
def _conv2d_ref(x, w, b, pad):
    y = jax.lax.conv_general_dilated(
        x, w, window_strides=(1, 1), padding=[(pad, pad), (pad, pad)],
        dimension_numbers=("NCHW", "OIHW", "NCHW"))
    return y + b[None, :, None, None]


def _bn_train_ref(x, g, bt):
    mu = x.mean(axis=(0, 2, 3), keepdims=True)
    var = ((x - mu) ** 2).mean(axis=(0, 2, 3), keepdims=True)
    return (x - mu) / jnp.sqrt(var + EPS) * g[None, :, None, None] + bt[None, :, None, None]


def res_block_ref(x, p):
    out = _conv2d_ref(x, p["w1"], p["b1"], 1)
    out = jnp.maximum(_bn_train_ref(out, p["g1"], p["be1"]), 0.0)
    out = _conv2d_ref(out, p["w2"], p["b2"], 1)
    out = _bn_train_ref(out, p["g2"], p["be2"])
    res = _conv2d_ref(x, p["wr"], p["br"], 0)
    res = _bn_train_ref(res, p["g2"], p["be2"])
    return jnp.maximum(out + res, 0.0)


# ----------------------------- parameter init -----------------------------
def init_params(key, cin, cmid, cout):
    ks = jax.random.split(key, 3)

    def conv_init(k, cout_, cin_, kh, kw):
        fan_in = cin_ * kh * kw
        bound = 1.0 / (fan_in ** 0.5)
        kw_, kb_ = jax.random.split(k)
        w = jax.random.uniform(kw_, (cout_, cin_, kh, kw), jnp.float32, -bound, bound)
        b = jax.random.uniform(kb_, (cout_,), jnp.float32, -bound, bound)
        return w, b

    w1, b1 = conv_init(ks[0], cmid, cin, 3, 3)
    w2, b2 = conv_init(ks[1], cout, cmid, 3, 3)
    wr, br = conv_init(ks[2], cout, cin, 1, 1)
    return {
        "w1": w1, "b1": b1,
        "g1": jnp.ones((cmid,), jnp.float32), "be1": jnp.zeros((cmid,), jnp.float32),
        "w2": w2, "b2": b2,
        "g2": jnp.ones((cout,), jnp.float32), "be2": jnp.zeros((cout,), jnp.float32),
        "wr": wr, "br": br,
    }


if __name__ == "__main__":
    key = jax.random.PRNGKey(0)
    N, Cin, Cmid, Cout, H, W = 2, 4, 8, 4, 16, 16

    kx, kp = jax.random.split(key)
    x = jax.random.normal(kx, (N, Cin, H, W), jnp.float32)
    params = init_params(kp, Cin, Cmid, Cout)

    # pack weights / BN projections once (hoisted out of the per-call path)
    arrays, cfg = prepare_res_block(params, x.shape)

    apply_fn = jax.jit(functools.partial(res_block_pallas, cfg=cfg))
    out = jax.block_until_ready(apply_fn(x, arrays))

    ref = res_block_ref(x, params)
    assert out.shape == (N, Cout, H, W)
    err = float(jnp.max(jnp.abs(out - ref)))
    # bf16 MXU operands (f32 accumulate / f32 BN stats) => looser tolerance than all-f32.
    assert err < 5e-2, f"max abs err = {err}"

    print("KERNEL_OK")
</pallas_src>

<mosaic_0001>
module attributes {stable_mosaic.version = 11 : i64} {
  func.func @_res_block_kernel(%arg0: memref<16x128xf32, #tpu.memory_space<vmem>>, %arg1: memref<384x256xbf16, #tpu.memory_space<vmem>>, %arg2: memref<768x128xbf16, #tpu.memory_space<vmem>>, %arg3: memref<128x128xbf16, #tpu.memory_space<vmem>>, %arg4: memref<1x8xf32, #tpu.memory_space<vmem>>, %arg5: memref<1x8xf32, #tpu.memory_space<vmem>>, %arg6: memref<1x4xf32, #tpu.memory_space<vmem>>, %arg7: memref<1x4xf32, #tpu.memory_space<vmem>>, %arg8: memref<256x8xf32, #tpu.memory_space<vmem>>, %arg9: memref<8x256xf32, #tpu.memory_space<vmem>>, %arg10: memref<128x4xf32, #tpu.memory_space<vmem>>, %arg11: memref<4x128xf32, #tpu.memory_space<vmem>>, %arg12: memref<16x128xf32, #tpu.memory_space<vmem>>) attributes {dimension_semantics = [], scalar_prefetch = 0 : i64, scratch_operands = 0 : i64, tpu.core_type = #tpu.core_type<tc>} {
    %c0 = arith.constant 0 : index
    %c0_0 = arith.constant 0 : index
    %0 = vector.load %arg0[%c0, %c0_0] : memref<16x128xf32, #tpu.memory_space<vmem>>, vector<16x128xf32>
    %1 = tpu.iota {dimensions = array<i32: 0>} : vector<16x1xi32>
    %c8_i32 = arith.constant 8 : i32
    %c0_i32 = arith.constant 0 : i32
    %2 = arith.cmpi eq, %c8_i32, %c0_i32 : i32
    %c1_i32 = arith.constant 1 : i32
    %3 = arith.select %2, %c1_i32, %c8_i32 : i32
    %4 = vector.broadcast %3 : i32 to vector<16x1xi32>
    %5 = arith.remsi %1, %4 : vector<16x1xi32>
    %c0_i32_1 = arith.constant 0 : i32
    %6 = vector.broadcast %c0_i32_1 : i32 to vector<16x1xi32>
    %7 = arith.cmpi ne, %5, %6 : vector<16x1xi32>
    %c0_i32_2 = arith.constant 0 : i32
    %8 = vector.broadcast %c0_i32_2 : i32 to vector<16x1xi32>
    %9 = arith.cmpi slt, %5, %8 : vector<16x1xi32>
    %c0_i32_3 = arith.constant 0 : i32
    %10 = arith.cmpi slt, %3, %c0_i32_3 : i32
    %11 = vector.broadcast %10 : i1 to vector<16x1xi1>
    %12 = vector.broadcast %11 : vector<16x1xi1> to vector<16x1xi1>
    %13 = arith.xori %9, %12 : vector<16x1xi1>
    %14 = arith.andi %13, %7 : vector<16x1xi1>
    %15 = vector.broadcast %3 : i32 to vector<16x1xi32>
    %16 = arith.addi %5, %15 : vector<16x1xi32>
    %17 = arith.select %14, %16, %5 : vector<16x1xi1>, vector<16x1xi32>
    %c0_i32_4 = arith.constant 0 : i32
    %18 = vector.broadcast %c0_i32_4 : i32 to vector<16x1xi32>
    %19 = arith.cmpi sgt, %17, %18 : vector<16x1xi32>
    %20 = arith.extui %19 : vector<16x1xi1> to vector<16x1xi32>
    %21 = arith.sitofp %20 : vector<16x1xi32> to vector<16x1xf32>
    %c7_i32 = arith.constant 7 : i32
    %22 = vector.broadcast %c7_i32 : i32 to vector<16x1xi32>
    %23 = arith.cmpi slt, %17, %22 : vector<16x1xi32>
    %24 = arith.extui %23 : vector<16x1xi1> to vector<16x1xi32>
    %25 = arith.sitofp %24 : vector<16x1xi32> to vector<16x1xf32>
    %c0_5 = arith.constant 0 : index
    %c0_6 = arith.constant 0 : index
    %26 = vector.load %arg4[%c0_5, %c0_6] : memref<1x8xf32, #tpu.memory_space<vmem>>, vector<1x8xf32>
    %c0_7 = arith.constant 0 : index
    %c0_8 = arith.constant 0 : index
    %27 = vector.load %arg5[%c0_7, %c0_8] : memref<1x8xf32, #tpu.memory_space<vmem>>, vector<1x8xf32>
    %c0_9 = arith.constant 0 : index
    %c0_10 = arith.constant 0 : index
    %28 = vector.load %arg6[%c0_9, %c0_10] : memref<1x4xf32, #tpu.memory_space<vmem>>, vector<1x4xf32>
    %c0_11 = arith.constant 0 : index
    %c0_12 = arith.constant 0 : index
    %29 = vector.load %arg7[%c0_11, %c0_12] : memref<1x4xf32, #tpu.memory_space<vmem>>, vector<1x4xf32>
    %c1_i32_13 = arith.constant 1 : i32
    %30 = tpu.dynamic_rotate %0 by %c1_i32_13 dim 0 : vector<16x128xf32>, i32 -> vector<16x128xf32>
    %31 = vector.broadcast %21 : vector<16x1xf32> to vector<16x128xf32>
    %32 = arith.mulf %30, %31 : vector<16x128xf32>
    %c15_i32 = arith.constant 15 : i32
    %33 = tpu.dynamic_rotate %0 by %c15_i32 dim 0 : vector<16x128xf32>, i32 -> vector<16x128xf32>
    %34 = vector.broadcast %25 : vector<16x1xf32> to vector<16x128xf32>
    %35 = arith.mulf %33, %34 : vector<16x128xf32>
    %36 = tpu.concatenate %32, %0, %35 in 1 : vector<16x128xf32>, vector<16x128xf32>, vector<16x128xf32> -> vector<16x384xf32>
    %37 = arith.truncf %36 : vector<16x384xf32> to vector<16x384xbf16>
    %c0_14 = arith.constant 0 : index
    %c0_15 = arith.constant 0 : index
    %38 = vector.load %arg1[%c0_14, %c0_15] : memref<384x256xbf16, #tpu.memory_space<vmem>>, vector<384x256xbf16>
    %cst = arith.constant dense<0.000000e+00> : vector<16x256xf32>
    %39 = tpu.matmul %37, %38, %cst {dimension_numbers = #tpu.dot_dimension_numbers<[1], [0], [0], [1], [0, 0, 1, 1], [], []>} : vector<16x384xbf16>, vector<384x256xbf16>, vector<16x256xf32> -> vector<16x256xf32>
    %cst_16 = arith.constant dense<0.000000e+00> : vector<256xf32>
    %40 = vector.multi_reduction <add>, %39, %cst_16 [0] : vector<16x256xf32> to vector<256xf32>
    %41 = vector.shape_cast %40 : vector<256xf32> to vector<1x256xf32>
    %42 = arith.mulf %39, %39 : vector<16x256xf32>
    %cst_17 = arith.constant dense<0.000000e+00> : vector<256xf32>
    %43 = vector.multi_reduction <add>, %42, %cst_17 [0] : vector<16x256xf32> to vector<256xf32>
    %44 = vector.shape_cast %43 : vector<256xf32> to vector<1x256xf32>
    %45 = tpu.iota {dimensions = array<i32: 0>} : vector<2x256xi32>
    %c0_i32_18 = arith.constant 0 : i32
    %46 = vector.broadcast %c0_i32_18 : i32 to vector<2x256xi32>
    %47 = arith.cmpi eq, %45, %46 : vector<2x256xi32>
    %48 = vector.shape_cast %41 : vector<1x256xf32> to vector<1x256xf32>
    %49 = vector.broadcast %48 : vector<1x256xf32> to vector<2x256xf32>
    %50 = vector.shape_cast %44 : vector<1x256xf32> to vector<1x256xf32>
    %51 = vector.broadcast %50 : vector<1x256xf32> to vector<2x256xf32>
    %52 = arith.select %47, %49, %51 : vector<2x256xi1>, vector<2x256xf32>
    %c0_19 = arith.constant 0 : index
    %c0_20 = arith.constant 0 : index
    %53 = vector.load %arg8[%c0_19, %c0_20] : memref<256x8xf32, #tpu.memory_space<vmem>>, vector<256x8xf32>
    %cst_21 = arith.constant dense<0.000000e+00> : vector<2x8xf32>
    %54 = tpu.matmul %52, %53, %cst_21 {dimension_numbers = #tpu.dot_dimension_numbers<[1], [0], [0], [1], [0, 0, 1, 1], [], []>} : vector<2x256xf32>, vector<256x8xf32>, vector<2x8xf32> -> vector<2x8xf32>
    %55 = vector.extract_strided_slice %54 {offsets = [0, 0], sizes = [1, 8], strides = [1, 1]} : vector<2x8xf32> to vector<1x8xf32>
    %cst_22 = arith.constant 0.001953125 : f32
    %56 = vector.broadcast %cst_22 : f32 to vector<1x8xf32>
    %57 = arith.mulf %55, %56 : vector<1x8xf32>
    %58 = vector.extract_strided_slice %54 {offsets = [1, 0], sizes = [1, 8], strides = [1, 1]} : vector<2x8xf32> to vector<1x8xf32>
    %cst_23 = arith.constant 0.001953125 : f32
    %59 = vector.broadcast %cst_23 : f32 to vector<1x8xf32>
    %60 = arith.mulf %58, %59 : vector<1x8xf32>
    %61 = arith.mulf %57, %57 : vector<1x8xf32>
    %62 = arith.subf %60, %61 : vector<1x8xf32>
    %cst_24 = arith.constant 9.99999974E-6 : f32
    %63 = vector.broadcast %cst_24 : f32 to vector<1x8xf32>
    %64 = arith.addf %62, %63 : vector<1x8xf32>
    %65 = math.rsqrt %64 : vector<1x8xf32>
    %66 = arith.mulf %26, %65 : vector<1x8xf32>
    %67 = arith.mulf %57, %66 : vector<1x8xf32>
    %68 = arith.subf %27, %67 : vector<1x8xf32>
    %69 = tpu.iota {dimensions = array<i32: 0>} : vector<2x8xi32>
    %c0_i32_25 = arith.constant 0 : i32
    %70 = vector.broadcast %c0_i32_25 : i32 to vector<2x8xi32>
    %71 = arith.cmpi eq, %69, %70 : vector<2x8xi32>
    %72 = vector.shape_cast %66 : vector<1x8xf32> to vector<1x8xf32>
    %73 = vector.broadcast %72 : vector<1x8xf32> to vector<2x8xf32>
    %74 = vector.shape_cast %68 : vector<1x8xf32> to vector<1x8xf32>
    %75 = vector.broadcast %74 : vector<1x8xf32> to vector<2x8xf32>
    %76 = arith.select %71, %73, %75 : vector<2x8xi1>, vector<2x8xf32>
    %c0_26 = arith.constant 0 : index
    %c0_27 = arith.constant 0 : index
    %77 = vector.load %arg9[%c0_26, %c0_27] : memref<8x256xf32, #tpu.memory_space<vmem>>, vector<8x256xf32>
    %cst_28 = arith.constant dense<0.000000e+00> : vector<2x256xf32>
    %78 = tpu.matmul %76, %77, %cst_28 {dimension_numbers = #tpu.dot_dimension_numbers<[1], [0], [0], [1], [0, 0, 1, 1], [], []>} : vector<2x8xf32>, vector<8x256xf32>, vector<2x256xf32> -> vector<2x256xf32>
    %79 = vector.extract_strided_slice %78 {offsets = [0, 0], sizes = [1, 256], strides = [1, 1]} : vector<2x256xf32> to vector<1x256xf32>
    %80 = vector.broadcast %79 : vector<1x256xf32> to vector<16x256xf32>
    %81 = arith.mulf %39, %80 : vector<16x256xf32>
    %82 = vector.extract_strided_slice %78 {offsets = [1, 0], sizes = [1, 256], strides = [1, 1]} : vector<2x256xf32> to vector<1x256xf32>
    %83 = vector.broadcast %82 : vector<1x256xf32> to vector<16x256xf32>
    %84 = arith.addf %81, %83 : vector<16x256xf32>
    %cst_29 = arith.constant 0.000000e+00 : f32
    %85 = vector.broadcast %cst_29 : f32 to vector<16x256xf32>
    %86 = arith.maximumf %84, %85 : vector<16x256xf32>
    %c1_i32_30 = arith.constant 1 : i32
    %87 = tpu.dynamic_rotate %86 by %c1_i32_30 dim 0 : vector<16x256xf32>, i32 -> vector<16x256xf32>
    %88 = vector.broadcast %21 : vector<16x1xf32> to vector<16x256xf32>
    %89 = arith.mulf %87, %88 : vector<16x256xf32>
    %c15_i32_31 = arith.constant 15 : i32
    %90 = tpu.dynamic_rotate %86 by %c15_i32_31 dim 0 : vector<16x256xf32>, i32 -> vector<16x256xf32>
    %91 = vector.broadcast %25 : vector<16x1xf32> to vector<16x256xf32>
    %92 = arith.mulf %90, %91 : vector<16x256xf32>
    %93 = tpu.concatenate %89, %86, %92 in 1 : vector<16x256xf32>, vector<16x256xf32>, vector<16x256xf32> -> vector<16x768xf32>
    %94 = arith.truncf %93 : vector<16x768xf32> to vector<16x768xbf16>
    %c0_32 = arith.constant 0 : index
    %c0_33 = arith.constant 0 : index
    %95 = vector.load %arg2[%c0_32, %c0_33] : memref<768x128xbf16, #tpu.memory_space<vmem>>, vector<768x128xbf16>
    %cst_34 = arith.constant dense<0.000000e+00> : vector<16x128xf32>
    %96 = tpu.matmul %94, %95, %cst_34 {dimension_numbers = #tpu.dot_dimension_numbers<[1], [0], [0], [1], [0, 0, 1, 1], [], []>} : vector<16x768xbf16>, vector<768x128xbf16>, vector<16x128xf32> -> vector<16x128xf32>
    %97 = arith.truncf %0 : vector<16x128xf32> to vector<16x128xbf16>
    %c0_35 = arith.constant 0 : index
    %c0_36 = arith.constant 0 : index
    %98 = vector.load %arg3[%c0_35, %c0_36] : memref<128x128xbf16, #tpu.memory_space<vmem>>, vector<128x128xbf16>
    %cst_37 = arith.constant dense<0.000000e+00> : vector<16x128xf32>
    %99 = tpu.matmul %97, %98, %cst_37 {dimension_numbers = #tpu.dot_dimension_numbers<[1], [0], [0], [1], [0, 0, 1, 1], [], []>} : vector<16x128xbf16>, vector<128x128xbf16>, vector<16x128xf32> -> vector<16x128xf32>
    %cst_38 = arith.constant dense<0.000000e+00> : vector<128xf32>
    %100 = vector.multi_reduction <add>, %96, %cst_38 [0] : vector<16x128xf32> to vector<128xf32>
    %101 = vector.shape_cast %100 : vector<128xf32> to vector<1x128xf32>
    %102 = arith.mulf %96, %96 : vector<16x128xf32>
    %cst_39 = arith.constant dense<0.000000e+00> : vector<128xf32>
    %103 = vector.multi_reduction <add>, %102, %cst_39 [0] : vector<16x128xf32> to vector<128xf32>
    %104 = vector.shape_cast %103 : vector<128xf32> to vector<1x128xf32>
    %cst_40 = arith.constant dense<0.000000e+00> : vector<128xf32>
    %105 = vector.multi_reduction <add>, %99, %cst_40 [0] : vector<16x128xf32> to vector<128xf32>
    %106 = vector.shape_cast %105 : vector<128xf32> to vector<1x128xf32>
    %107 = arith.mulf %99, %99 : vector<16x128xf32>
    %cst_41 = arith.constant dense<0.000000e+00> : vector<128xf32>
    %108 = vector.multi_reduction <add>, %107, %cst_41 [0] : vector<16x128xf32> to vector<128xf32>
    %109 = vector.shape_cast %108 : vector<128xf32> to vector<1x128xf32>
    %110 = tpu.iota {dimensions = array<i32: 0>} : vector<4x128xi32>
    %c2_i32 = arith.constant 2 : i32
    %111 = vector.broadcast %c2_i32 : i32 to vector<4x128xi32>
    %112 = arith.cmpi eq, %110, %111 : vector<4x128xi32>
    %113 = vector.shape_cast %106 : vector<1x128xf32> to vector<1x128xf32>
    %114 = vector.broadcast %113 : vector<1x128xf32> to vector<4x128xf32>
    %115 = vector.shape_cast %109 : vector<1x128xf32> to vector<1x128xf32>
    %116 = vector.broadcast %115 : vector<1x128xf32> to vector<4x128xf32>
    %117 = arith.select %112, %114, %116 : vector<4x128xi1>, vector<4x128xf32>
    %c1_i32_42 = arith.constant 1 : i32
    %118 = vector.broadcast %c1_i32_42 : i32 to vector<4x128xi32>
    %119 = arith.cmpi eq, %110, %118 : vector<4x128xi32>
    %120 = vector.shape_cast %104 : vector<1x128xf32> to vector<1x128xf32>
    %121 = vector.broadcast %120 : vector<1x128xf32> to vector<4x128xf32>
    %122 = arith.select %119, %121, %117 : vector<4x128xi1>, vector<4x128xf32>
    %c0_i32_43 = arith.constant 0 : i32
    %123 = vector.broadcast %c0_i32_43 : i32 to vector<4x128xi32>
    %124 = arith.cmpi eq, %110, %123 : vector<4x128xi32>
    %125 = vector.shape_cast %101 : vector<1x128xf32> to vector<1x128xf32>
    %126 = vector.broadcast %125 : vector<1x128xf32> to vector<4x128xf32>
    %127 = arith.select %124, %126, %122 : vector<4x128xi1>, vector<4x128xf32>
    %c0_44 = arith.constant 0 : index
    %c0_45 = arith.constant 0 : index
    %128 = vector.load %arg10[%c0_44, %c0_45] : memref<128x4xf32, #tpu.memory_space<vmem>>, vector<128x4xf32>
    %cst_46 = arith.constant dense<0.000000e+00> : vector<4x4xf32>
    %129 = tpu.matmul %127, %128, %cst_46 {dimension_numbers = #tpu.dot_dimension_numbers<[1], [0], [0], [1], [0, 0, 1, 1], [], []>} : vector<4x128xf32>, vector<128x4xf32>, vector<4x4xf32> -> vector<4x4xf32>
    %130 = vector.extract_strided_slice %129 {offsets = [0, 0], sizes = [2, 4], strides = [1, 1]} : vector<4x4xf32> to vector<2x4xf32>
    %131 = vector.extract_strided_slice %130 {offsets = [0, 0], sizes = [1, 4], strides = [1, 1]} : vector<2x4xf32> to vector<1x4xf32>
    %cst_47 = arith.constant 0.001953125 : f32
    %132 = vector.broadcast %cst_47 : f32 to vector<1x4xf32>
    %133 = arith.mulf %131, %132 : vector<1x4xf32>
    %134 = vector.extract_strided_slice %130 {offsets = [1, 0], sizes = [1, 4], strides = [1, 1]} : vector<2x4xf32> to vector<1x4xf32>
    %cst_48 = arith.constant 0.001953125 : f32
    %135 = vector.broadcast %cst_48 : f32 to vector<1x4xf32>
    %136 = arith.mulf %134, %135 : vector<1x4xf32>
    %137 = arith.mulf %133, %133 : vector<1x4xf32>
    %138 = arith.subf %136, %137 : vector<1x4xf32>
    %cst_49 = arith.constant 9.99999974E-6 : f32
    %139 = vector.broadcast %cst_49 : f32 to vector<1x4xf32>
    %140 = arith.addf %138, %139 : vector<1x4xf32>
    %141 = math.rsqrt %140 : vector<1x4xf32>
    %142 = arith.mulf %28, %141 : vector<1x4xf32>
    %143 = arith.mulf %133, %142 : vector<1x4xf32>
    %144 = arith.subf %29, %143 : vector<1x4xf32>
    %145 = vector.extract_strided_slice %129 {offsets = [2, 0], sizes = [2, 4], strides = [1, 1]} : vector<4x4xf32> to vector<2x4xf32>
    %146 = vector.extract_strided_slice %145 {offsets = [0, 0], sizes = [1, 4], strides = [1, 1]} : vector<2x4xf32> to vector<1x4xf32>
    %cst_50 = arith.constant 0.001953125 : f32
    %147 = vector.broadcast %cst_50 : f32 to vector<1x4xf32>
    %148 = arith.mulf %146, %147 : vector<1x4xf32>
    %149 = vector.extract_strided_slice %145 {offsets = [1, 0], sizes = [1, 4], strides = [1, 1]} : vector<2x4xf32> to vector<1x4xf32>
    %cst_51 = arith.constant 0.001953125 : f32
    %150 = vector.broadcast %cst_51 : f32 to vector<1x4xf32>
    %151 = arith.mulf %149, %150 : vector<1x4xf32>
    %152 = arith.mulf %148, %148 : vector<1x4xf32>
    %153 = arith.subf %151, %152 : vector<1x4xf32>
    %cst_52 = arith.constant 9.99999974E-6 : f32
    %154 = vector.broadcast %cst_52 : f32 to vector<1x4xf32>
    %155 = arith.addf %153, %154 : vector<1x4xf32>
    %156 = math.rsqrt %155 : vector<1x4xf32>
    %157 = arith.mulf %28, %156 : vector<1x4xf32>
    %158 = arith.mulf %148, %157 : vector<1x4xf32>
    %159 = arith.subf %29, %158 : vector<1x4xf32>
    %160 = tpu.iota {dimensions = array<i32: 0>} : vector<4x4xi32>
    %c2_i32_53 = arith.constant 2 : i32
    %161 = vector.broadcast %c2_i32_53 : i32 to vector<4x4xi32>
    %162 = arith.cmpi eq, %160, %161 : vector<4x4xi32>
    %163 = vector.shape_cast %157 : vector<1x4xf32> to vector<1x4xf32>
    %164 = vector.broadcast %163 : vector<1x4xf32> to vector<4x4xf32>
    %165 = vector.shape_cast %159 : vector<1x4xf32> to vector<1x4xf32>
    %166 = vector.broadcast %165 : vector<1x4xf32> to vector<4x4xf32>
    %167 = arith.select %162, %164, %166 : vector<4x4xi1>, vector<4x4xf32>
    %c1_i32_54 = arith.constant 1 : i32
    %168 = vector.broadcast %c1_i32_54 : i32 to vector<4x4xi32>
    %169 = arith.cmpi eq, %160, %168 : vector<4x4xi32>
    %170 = vector.shape_cast %144 : vector<1x4xf32> to vector<1x4xf32>
    %171 = vector.broadcast %170 : vector<1x4xf32> to vector<4x4xf32>
    %172 = arith.select %169, %171, %167 : vector<4x4xi1>, vector<4x4xf32>
    %c0_i32_55 = arith.constant 0 : i32
    %173 = vector.broadcast %c0_i32_55 : i32 to vector<4x4xi32>
    %174 = arith.cmpi eq, %160, %173 : vector<4x4xi32>
    %175 = vector.shape_cast %142 : vector<1x4xf32> to vector<1x4xf32>
    %176 = vector.broadcast %175 : vector<1x4xf32> to vector<4x4xf32>
    %177 = arith.select %174, %176, %172 : vector<4x4xi1>, vector<4x4xf32>
    %c0_56 = arith.constant 0 : index
    %c0_57 = arith.constant 0 : index
    %178 = vector.load %arg11[%c0_56, %c0_57] : memref<4x128xf32, #tpu.memory_space<vmem>>, vector<4x128xf32>
    %cst_58 = arith.constant dense<0.000000e+00> : vector<4x128xf32>
    %179 = tpu.matmul %177, %178, %cst_58 {dimension_numbers = #tpu.dot_dimension_numbers<[1], [0], [0], [1], [0, 0, 1, 1], [], []>} : vector<4x4xf32>, vector<4x128xf32>, vector<4x128xf32> -> vector<4x128xf32>
    %180 = vector.extract_strided_slice %179 {offsets = [0, 0], sizes = [1, 128], strides = [1, 1]} : vector<4x128xf32> to vector<1x128xf32>
    %181 = vector.broadcast %180 : vector<1x128xf32> to vector<16x128xf32>
    %182 = arith.mulf %96, %181 : vector<16x128xf32>
    %183 = vector.extract_strided_slice %179 {offsets = [1, 0], sizes = [1, 128], strides = [1, 1]} : vector<4x128xf32> to vector<1x128xf32>
    %184 = vector.broadcast %183 : vector<1x128xf32> to vector<16x128xf32>
    %185 = arith.addf %182, %184 : vector<16x128xf32>
    %186 = vector.extract_strided_slice %179 {offsets = [2, 0], sizes = [1, 128], strides = [1, 1]} : vector<4x128xf32> to vector<1x128xf32>
    %187 = vector.broadcast %186 : vector<1x128xf32> to vector<16x128xf32>
    %188 = arith.mulf %99, %187 : vector<16x128xf32>
    %189 = vector.extract_strided_slice %179 {offsets = [3, 0], sizes = [1, 128], strides = [1, 1]} : vector<4x128xf32> to vector<1x128xf32>
    %190 = vector.broadcast %189 : vector<1x128xf32> to vector<16x128xf32>
    %191 = arith.addf %188, %190 : vector<16x128xf32>
    %192 = arith.addf %185, %191 : vector<16x128xf32>
    %cst_59 = arith.constant 0.000000e+00 : f32
    %193 = vector.broadcast %cst_59 : f32 to vector<16x128xf32>
    %194 = arith.maximumf %192, %193 : vector<16x128xf32>
    %c0_60 = arith.constant 0 : index
    %c0_61 = arith.constant 0 : index
    %195 = vector.load %arg12[%c0_60, %c0_61] : memref<16x128xf32, #tpu.memory_space<vmem>>, vector<16x128xf32>
    tpu.vector_store %arg12[%c0_60, %c0_61], %194 {strides = array<i32>} : memref<16x128xf32, #tpu.memory_space<vmem>>, vector<16x128xf32>,
    return
  }
}

</mosaic_0001>

<llo_original>
// kernel: res_block_pallas.1
$region0: #{res_block_pallas.1}
  #allocation0 [shape = 'u32[]', space=smem, size = 0x4, offset = 0x4, fixed_abs, tag = 'smem constant byte address 0x4 - core index']
  #allocation1 [shape = 'u32[144,128]{1,0:T(1,128)}', space=vmem, size = 0x12000, scoped, tag = 'internal scratch']
  %s0 = inlined_call_operand.vmem [shape: f32[16,128], index: 0, kind: input, shape index: {}]
  %s1 = inlined_call_operand.vmem [shape: bf16[384,256], index: 1, kind: input, shape index: {}]
  %s2 = inlined_call_operand.vmem [shape: bf16[768,128], index: 2, kind: input, shape index: {}]
  %s3 = inlined_call_operand.vmem [shape: bf16[128,128], index: 3, kind: input, shape index: {}]
  %s4 = inlined_call_operand.vmem [shape: f32[1,8], index: 4, kind: input, shape index: {}]
  %s5 = inlined_call_operand.vmem [shape: f32[1,8], index: 5, kind: input, shape index: {}]
  %s6 = inlined_call_operand.vmem [shape: f32[1,4], index: 6, kind: input, shape index: {}]
  %s7 = inlined_call_operand.vmem [shape: f32[1,4], index: 7, kind: input, shape index: {}]
  %s8 = inlined_call_operand.vmem [shape: f32[256,8], index: 8, kind: input, shape index: {}]
  %s9 = inlined_call_operand.vmem [shape: f32[8,256], index: 9, kind: input, shape index: {}]
  %s10 = inlined_call_operand.vmem [shape: f32[128,4], index: 10, kind: input, shape index: {}]
  %s11 = inlined_call_operand.vmem [shape: f32[4,128], index: 11, kind: input, shape index: {}]
  %s12 = inlined_call_operand.vmem [shape: f32[16,128], index: 12, kind: output, shape index: {}]
  %s13 = sld [smem:[#allocation0]]
  $region58: #{res_block_pallas.1} parent=0
    _
  %s15 = ssub.s32 1, %s13
  %s16 = scalar_select 0, %s15, %s13
  // Predicated region
  $region2: #{res_block_pallas.1} parent=0 // pred_check
    _
  $region3: #{res_block_pallas.1} parent=0 // pred_check_branch
    %18 = sbr.rel (0) target = $region5
  $region4: #{res_block_pallas.1} parent=0 // pred_region
    _
  $region5: #{res_block_pallas.1} parent=0 // pred_fallthru
    _
  // Predicated region
  $region6: #{res_block_pallas.1} parent=0 // pred_check
    _
  $region7: #{res_block_pallas.1} parent=0 // pred_check_branch
    %20 = sbr.rel (0) target = $region9
  $region8: #{res_block_pallas.1} parent=0 // pred_region
    _
  $region9: #{res_block_pallas.1} parent=0 // pred_fallthru
    _
  // Predicated region
  $region10: #{res_block_pallas.1} parent=0 // pred_check
    _
  $region11: #{res_block_pallas.1} parent=0 // pred_check_branch
    %22 = sbr.rel (0) target = $region13
  $region12: #{res_block_pallas.1} parent=0 // pred_region
    _
  $region13: #{res_block_pallas.1} parent=0 // pred_fallthru
    _
  // Predicated region
  $region14: #{res_block_pallas.1} parent=0 // pred_check
    _
  $region15: #{res_block_pallas.1} parent=0 // pred_check_branch
    %24 = sbr.rel (0) target = $region17
  $region16: #{res_block_pallas.1} parent=0 // pred_region
    _
  $region17: #{res_block_pallas.1} parent=0 // pred_fallthru
    _
  // Predicated region
  $region18: #{res_block_pallas.1} parent=0 // pred_check
    _
  $region19: #{res_block_pallas.1} parent=0 // pred_check_branch
    %26 = sbr.rel (0) target = $region21
  $region20: #{res_block_pallas.1} parent=0 // pred_region
    _
  $region21: #{res_block_pallas.1} parent=0 // pred_fallthru
    _
  // Predicated region
  $region22: #{res_block_pallas.1} parent=0 // pred_check
    _
  $region23: #{res_block_pallas.1} parent=0 // pred_check_branch
    %28 = sbr.rel (0) target = $region25
  $region24: #{res_block_pallas.1} parent=0 // pred_region
    _
  $region25: #{res_block_pallas.1} parent=0 // pred_fallthru
    _
  // Predicated region
  $region26: #{res_block_pallas.1} parent=0 // pred_check
    _
  $region27: #{res_block_pallas.1} parent=0 // pred_check_branch
    %30 = sbr.rel (0) target = $region29
  $region28: #{res_block_pallas.1} parent=0 // pred_region
    _
  $region29: #{res_block_pallas.1} parent=0 // pred_fallthru
    _
  // Predicated region
  $region30: #{res_block_pallas.1} parent=0 // pred_check
    _
  $region31: #{res_block_pallas.1} parent=0 // pred_check_branch
    %32 = sbr.rel (0) target = $region33
  $region32: #{res_block_pallas.1} parent=0 // pred_region
    _
  $region33: #{res_block_pallas.1} parent=0 // pred_fallthru
    _
  // Predicated region
  $region34: #{res_block_pallas.1} parent=0 // pred_check
    _
  $region35: #{res_block_pallas.1} parent=0 // pred_check_branch
    %34 = sbr.rel (0) target = $region37
  $region36: #{res_block_pallas.1} parent=0 // pred_region
    _
  $region37: #{res_block_pallas.1} parent=0 // pred_fallthru
    _
  // Predicated region
  $region38: #{res_block_pallas.1} parent=0 // pred_check
    _
  $region39: #{res_block_pallas.1} parent=0 // pred_check_branch
    %36 = sbr.rel (0) target = $region41
  $region40: #{res_block_pallas.1} parent=0 // pred_region
    _
  $region41: #{res_block_pallas.1} parent=0 // pred_fallthru
    _
  // Predicated region
  $region42: #{res_block_pallas.1} parent=0 // pred_check
    _
  $region43: #{res_block_pallas.1} parent=0 // pred_check_branch
    %38 = sbr.rel (0) target = $region45
  $region44: #{res_block_pallas.1} parent=0 // pred_region
    _
  $region45: #{res_block_pallas.1} parent=0 // pred_fallthru
    _
  // Predicated region
  $region46: #{res_block_pallas.1} parent=0 // pred_check
    _
  $region47: #{res_block_pallas.1} parent=0 // pred_check_branch
    %40 = sbr.rel (0) target = $region49
  $region48: #{res_block_pallas.1} parent=0 // pred_region
    _
  $region49: #{res_block_pallas.1} parent=0 // pred_fallthru
    _
  %v42 = vld [vmem:[%s0] sm:$0xff]
  %v43 = vld [vmem:[%s0 + $0x8] sm:$0xff]
  %v44 = vlaneseq
  %v45 = vshrl.u32 %v44, 7
  %v46 = vadd.s32 %v45, 8
  %vm47 = vcmp.lt.s32.totalorder %v45, 0
  %v48 = vsub.s32 0, %v45
  %v49 = vsel %vm47, %v48, %v45
  %v50 = vshrl.u32 %v49, 3
  %v51 = vand.u32 %v49, 7
  %v52 = vsub.s32 0, %v51
  %v53 = vsel %vm47, %v52, %v51
  %vm54 = vcmp.lt.s32.totalorder %v46, 0
  %v55 = vsub.s32 0, %v46
  %v56 = vsel %vm54, %v55, %v46
  %v57 = vshrl.u32 %v56, 3
  %v58 = vand.u32 %v56, 7
  %v59 = vsub.s32 0, %v58
  %v60 = vsel %vm54, %v59, %v58
  %vm61 = vcmp.ne.s32.totalorder %v53, 0
  %vm62 = vcmp.ne.s32.totalorder %v60, 0
  %vm63 = vcmp.lt.s32.totalorder %v53, 0
  %vm64 = vcmp.lt.s32.totalorder %v60, 0
  %vm65 = vmand %vm63, %vm61
  %vm66 = vmand %vm64, %vm62
  %v67 = vadd.s32 %v53, 8
  %v68 = vadd.s32 %v60, 8
  %v69 = vsel %vm65, %v67, %v53
  %v70 = vsel %vm66, %v68, %v60
  %vm71 = vcmp.gt.s32.totalorder %v69, 0
  %vm72 = vcmp.gt.s32.totalorder %v70, 0
  %v73 = vsel %vm71, 1, 0
  %v74 = vsel %vm72, 1, 0
  %v75 = vcvt.s32.f32 %v73
  %v76 = vcvt.s32.f32 %v74
  %vm77 = vcmp.lt.s32.totalorder %v69, 7
  %vm78 = vcmp.lt.s32.totalorder %v70, 7
  %v79 = vsel %vm77, 1, 0
  %v80 = vsel %vm78, 1, 0
  %v81 = vcvt.s32.f32 %v79
  %v82 = vcvt.s32.f32 %v80
  %v83 = vld [vmem:[%s4] sm:$0x1]
  %v84 = vld [vmem:[%s5] sm:$0x1]
  %v85 = vld [vmem:[%s6] sm:$0x1]
  %v86 = vld [vmem:[%s7] sm:$0x1]
  %v87 = vrot.slane %v42, 7
  %v88 = vrot.slane %v43, 7
  %vm89 = vcmp.lt.s32.totalorder %v45, 1
  %v90 = vsel %vm89, %v87, %v88
  %v91 = vsel %vm89, %v88, %v87
  %v92 = vmul.f32 %v91, %v75
  %v93 = vmul.f32 %v90, %v76
  %v94 = vrot.slane %v42, 1
  %v95 = vrot.slane %v43, 1
  %vm96 = vcmp.lt.s32.totalorder %v45, 7
  %v97 = vsel %vm96, %v94, %v95
  %v98 = vsel %vm96, %v95, %v94
  %v99 = vmul.f32 %v97, %v81
  %v100 = vmul.f32 %v98, %v82
  %v101 = vpack.c.bf16 %v93, %v92
  %v102 = vpack.c.bf16 %v43, %v42
  %v103 = vpack.c.bf16 %v100, %v99
  %v104 = vld [vmem:[%s1] sm:$0xff]
  %v105 = vld [vmem:[%s1 + $0x8] sm:$0xff]
  %v106 = vld [vmem:[%s1 + $0x10] sm:$0xff]
  %v107 = vld [vmem:[%s1 + $0x18] sm:$0xff]
  %v108 = vld [vmem:[%s1 + $0x20] sm:$0xff]
  %v109 = vld [vmem:[%s1 + $0x28] sm:$0xff]
  %v110 = vld [vmem:[%s1 + $0x30] sm:$0xff]
  %v111 = vld [vmem:[%s1 + $0x38] sm:$0xff]
  %v112 = vld [vmem:[%s1 + $0x40] sm:$0xff]
  %v113 = vld [vmem:[%s1 + $0x48] sm:$0xff]
  %v114 = vld [vmem:[%s1 + $0x50] sm:$0xff]
  %v115 = vld [vmem:[%s1 + $0x58] sm:$0xff]
  %v116 = vld [vmem:[%s1 + $0x60] sm:$0xff]
  %v117 = vld [vmem:[%s1 + $0x68] sm:$0xff]
  %v118 = vld [vmem:[%s1 + $0x70] sm:$0xff]
  %v119 = vld [vmem:[%s1 + $0x78] sm:$0xff]
  %v120 = vld [vmem:[%s1 + $0x80] sm:$0xff]
  %v121 = vld [vmem:[%s1 + $0x88] sm:$0xff]
  %v122 = vld [vmem:[%s1 + $0x90] sm:$0xff]
  %v123 = vld [vmem:[%s1 + $0x98] sm:$0xff]
  %v124 = vld [vmem:[%s1 + $0xa0] sm:$0xff]
  %v125 = vld [vmem:[%s1 + $0xa8] sm:$0xff]
  %v126 = vld [vmem:[%s1 + $0xb0] sm:$0xff]
  %v127 = vld [vmem:[%s1 + $0xb8] sm:$0xff]
  %v128 = vld [vmem:[%s1 + $0xc0] sm:$0xff]
  %v129 = vld [vmem:[%s1 + $0xc8] sm:$0xff]
  %v130 = vld [vmem:[%s1 + $0xd0] sm:$0xff]
  %v131 = vld [vmem:[%s1 + $0xd8] sm:$0xff]
  %v132 = vld [vmem:[%s1 + $0xe0] sm:$0xff]
  %v133 = vld [vmem:[%s1 + $0xe8] sm:$0xff]
  %v134 = vld [vmem:[%s1 + $0xf0] sm:$0xff]
  %v135 = vld [vmem:[%s1 + $0xf8] sm:$0xff]
  %v136 = vld [vmem:[%s1 + $0x100] sm:$0xff]
  %v137 = vld [vmem:[%s1 + $0x108] sm:$0xff]
  %v138 = vld [vmem:[%s1 + $0x110] sm:$0xff]
  %v139 = vld [vmem:[%s1 + $0x118] sm:$0xff]
  %v140 = vld [vmem:[%s1 + $0x120] sm:$0xff]
  %v141 = vld [vmem:[%s1 + $0x128] sm:$0xff]
  %v142 = vld [vmem:[%s1 + $0x130] sm:$0xff]
  %v143 = vld [vmem:[%s1 + $0x138] sm:$0xff]
  %v144 = vld [vmem:[%s1 + $0x140] sm:$0xff]
  %v145 = vld [vmem:[%s1 + $0x148] sm:$0xff]
  %v146 = vld [vmem:[%s1 + $0x150] sm:$0xff]
  %v147 = vld [vmem:[%s1 + $0x158] sm:$0xff]
  %v148 = vld [vmem:[%s1 + $0x160] sm:$0xff]
  %v149 = vld [vmem:[%s1 + $0x168] sm:$0xff]
  %v150 = vld [vmem:[%s1 + $0x170] sm:$0xff]
  %v151 = vld [vmem:[%s1 + $0x178] sm:$0xff]
  %v200 = vunpack.c.l.b16 %v104
  %v201 = vunpack.c.h.b16 %v104
  %v202 = vunpack.c.l.b16 %v105
  %v203 = vunpack.c.h.b16 %v105
  %v204 = vunpack.c.l.b16 %v106
  %v205 = vunpack.c.h.b16 %v106
  %v206 = vunpack.c.l.b16 %v107
  %v207 = vunpack.c.h.b16 %v107
  %v208 = vunpack.c.l.b16 %v108
  %v209 = vunpack.c.h.b16 %v108
  %v210 = vunpack.c.l.b16 %v109
  %v211 = vunpack.c.h.b16 %v109
  %v212 = vunpack.c.l.b16 %v110
  %v213 = vunpack.c.h.b16 %v110
  %v214 = vunpack.c.l.b16 %v111
  %v215 = vunpack.c.h.b16 %v111
  %v216 = vunpack.c.l.b16 %v112
  %v217 = vunpack.c.h.b16 %v112
  %v218 = vunpack.c.l.b16 %v113
  %v219 = vunpack.c.h.b16 %v113
  %v220 = vunpack.c.l.b16 %v114
  %v221 = vunpack.c.h.b16 %v114
  %v222 = vunpack.c.l.b16 %v115
  %v223 = vunpack.c.h.b16 %v115
  %v224 = vunpack.c.l.b16 %v116
  %v225 = vunpack.c.h.b16 %v116
  %v226 = vunpack.c.l.b16 %v117
  %v227 = vunpack.c.h.b16 %v117
  %v228 = vunpack.c.l.b16 %v118
  %v229 = vunpack.c.h.b16 %v118
  %v230 = vunpack.c.l.b16 %v119
  %v231 = vunpack.c.h.b16 %v119
  %v232 = vunpack.c.l.b16 %v120
  %v233 = vunpack.c.h.b16 %v120
  %v234 = vunpack.c.l.b16 %v121
  %v235 = vunpack.c.h.b16 %v121
  %v236 = vunpack.c.l.b16 %v122
  %v237 = vunpack.c.h.b16 %v122
  %v238 = vunpack.c.l.b16 %v123
  %v239 = vunpack.c.h.b16 %v123
  %v240 = vunpack.c.l.b16 %v124
  %v241 = vunpack.c.h.b16 %v124
  %v242 = vunpack.c.l.b16 %v125
  %v243 = vunpack.c.h.b16 %v125
  %v244 = vunpack.c.l.b16 %v126
  %v245 = vunpack.c.h.b16 %v126
  %v246 = vunpack.c.l.b16 %v127
  %v247 = vunpack.c.h.b16 %v127
  %v248 = vunpack.c.l.b16 %v128
  %v249 = vunpack.c.h.b16 %v128
  %v250 = vunpack.c.l.b16 %v129
  %v251 = vunpack.c.h.b16 %v129
  %v252 = vunpack.c.l.b16 %v130
  %v253 = vunpack.c.h.b16 %v130
  %v254 = vunpack.c.l.b16 %v131
  %v255 = vunpack.c.h.b16 %v131
  %v256 = vunpack.c.l.b16 %v132
  %v257 = vunpack.c.h.b16 %v132
  %v258 = vunpack.c.l.b16 %v133
  %v259 = vunpack.c.h.b16 %v133
  %v260 = vunpack.c.l.b16 %v134
  %v261 = vunpack.c.h.b16 %v134
  %v262 = vunpack.c.l.b16 %v135
  %v263 = vunpack.c.h.b16 %v135
  %v264 = vunpack.c.l.b16 %v136
  %v265 = vunpack.c.h.b16 %v136
  %v266 = vunpack.c.l.b16 %v137
  %v267 = vunpack.c.h.b16 %v137
  %v268 = vunpack.c.l.b16 %v138
  %v269 = vunpack.c.h.b16 %v138
  %v270 = vunpack.c.l.b16 %v139
  %v271 = vunpack.c.h.b16 %v139
  %v272 = vunpack.c.l.b16 %v140
  %v273 = vunpack.c.h.b16 %v140
  %v274 = vunpack.c.l.b16 %v141
  %v275 = vunpack.c.h.b16 %v141
  %v276 = vunpack.c.l.b16 %v142
  %v277 = vunpack.c.h.b16 %v142
  %v278 = vunpack.c.l.b16 %v143
  %v279 = vunpack.c.h.b16 %v143
  %v280 = vunpack.c.l.b16 %v144
  %v281 = vunpack.c.h.b16 %v144
  %v282 = vunpack.c.l.b16 %v145
  %v283 = vunpack.c.h.b16 %v145
  %v284 = vunpack.c.l.b16 %v146
  %v285 = vunpack.c.h.b16 %v146
  %v286 = vunpack.c.l.b16 %v147
  %v287 = vunpack.c.h.b16 %v147
  %v288 = vunpack.c.l.b16 %v148
  %v289 = vunpack.c.h.b16 %v148
  %v290 = vunpack.c.l.b16 %v149
  %v291 = vunpack.c.h.b16 %v149
  %v292 = vunpack.c.l.b16 %v150
  %v293 = vunpack.c.h.b16 %v150
  %v294 = vunpack.c.l.b16 %v151
  %v295 = vunpack.c.h.b16 %v151
  %v296 = vpack.c.b16 %v202, %v200
  %v297 = vpack.c.b16 %v203, %v201
  %v298 = vpack.c.b16 %v206, %v204
  %v299 = vpack.c.b16 %v207, %v205
  %v300 = vpack.c.b16 %v210, %v208
  %v301 = vpack.c.b16 %v211, %v209
  %v302 = vpack.c.b16 %v214, %v212
  %v303 = vpack.c.b16 %v215, %v213
  %v304 = vpack.c.b16 %v218, %v216
  %v305 = vpack.c.b16 %v219, %v217
  %v306 = vpack.c.b16 %v222, %v220
  %v307 = vpack.c.b16 %v223, %v221
  %v308 = vpack.c.b16 %v226, %v224
  %v309 = vpack.c.b16 %v227, %v225
  %v310 = vpack.c.b16 %v230, %v228
  %v311 = vpack.c.b16 %v231, %v229
  %v312 = vpack.c.b16 %v234, %v232
  %v313 = vpack.c.b16 %v235, %v233
  %v314 = vpack.c.b16 %v238, %v236
  %v315 = vpack.c.b16 %v239, %v237
  %v316 = vpack.c.b16 %v242, %v240
  %v317 = vpack.c.b16 %v243, %v241
  %v318 = vpack.c.b16 %v246, %v244
  %v319 = vpack.c.b16 %v247, %v245
  %v320 = vpack.c.b16 %v250, %v248
  %v321 = vpack.c.b16 %v251, %v249
  %v322 = vpack.c.b16 %v254, %v252
  %v323 = vpack.c.b16 %v255, %v253
  %v324 = vpack.c.b16 %v258, %v256
  %v325 = vpack.c.b16 %v259, %v257
  %v326 = vpack.c.b16 %v262, %v260
  %v327 = vpack.c.b16 %v263, %v261
  %v328 = vpack.c.b16 %v266, %v264
  %v329 = vpack.c.b16 %v267, %v265
  %v330 = vpack.c.b16 %v270, %v268
  %v331 = vpack.c.b16 %v271, %v269
  %v332 = vpack.c.b16 %v274, %v272
  %v333 = vpack.c.b16 %v275, %v273
  %v334 = vpack.c.b16 %v278, %v276
  %v335 = vpack.c.b16 %v279, %v277
  %v336 = vpack.c.b16 %v282, %v280
  %v337 = vpack.c.b16 %v283, %v281
  %v338 = vpack.c.b16 %v286, %v284
  %v339 = vpack.c.b16 %v287, %v285
  %v340 = vpack.c.b16 %v290, %v288
  %v341 = vpack.c.b16 %v291, %v289
  %v342 = vpack.c.b16 %v294, %v292
  %v343 = vpack.c.b16 %v295, %v293
  %392 = vmatprep.subr.bf16.mxu0 %v297
  %393 = vmatpush1.bf16.msra.mxu0 %v296
  %394 = vmatprep.subr.bf16.mxu0 %v299
  %395 = vmatpush1.bf16.msra.mxu0 %v298
  %396 = vmatprep.subr.bf16.mxu0 %v301
  %397 = vmatpush1.bf16.msra.mxu0 %v300
  %398 = vmatprep.subr.bf16.mxu0 %v303
  %399 = vmatpush1.bf16.msra.mxu0 %v302
  %400 = vmatprep.subr.bf16.mxu0 %v305
  %401 = vmatpush1.bf16.msra.mxu0 %v304
  %402 = vmatprep.subr.bf16.mxu0 %v307
  %403 = vmatpush1.bf16.msra.mxu0 %v306
  %404 = vmatprep.subr.bf16.mxu0 %v309
  %405 = vmatpush1.bf16.msra.mxu0 %v308
  %406 = vmatprep.subr.bf16.mxu0 %v311
  %407 = vmatpush1.bf16.msra.mxu0 %v310
  %408 = vmatprep.subr.bf16.mxu0 %v313
  %409 = vmatpush1.bf16.msra.mxu0 %v312
  %410 = vmatprep.subr.bf16.mxu0 %v315
  %411 = vmatpush1.bf16.msra.mxu0 %v314
  %412 = vmatprep.subr.bf16.mxu0 %v317
  %413 = vmatpush1.bf16.msra.mxu0 %v316
  %414 = vmatprep.subr.bf16.mxu0 %v319
  %415 = vmatpush1.bf16.msra.mxu0 %v318
  %416 = vmatprep.subr.bf16.mxu0 %v321
  %417 = vmatpush1.bf16.msra.mxu0 %v320
  %418 = vmatprep.subr.bf16.mxu0 %v323
  %419 = vmatpush1.bf16.msra.mxu0 %v322
  %420 = vmatprep.subr.bf16.mxu0 %v325
  %421 = vmatpush1.bf16.msra.mxu0 %v324
  %422 = vmatprep.subr.bf16.mxu0 %v327
  %423 = vmatpush1.bf16.msra.mxu0 %v326
  %424 = vmatprep.mubr.bf16.mxu0 %v102
  %425 = vmatmul.mubr.bf16.gmra.mrb[0].mxu0 %v101
  %v426 = vpop.f32.mrb[0].mxu0
  %v427 = vadd.f32 0.0, %v426
  %v428 = vpop.f32.mrb[0].mxu0
  %v429 = vadd.f32 0.0, %v428
  %v430 = vpop.f32.mrb[0].mxu0
  %v431 = vadd.f32 0.0, %v430
  %v432 = vpop.f32.mrb[0].mxu0
  %v433 = vadd.f32 0.0, %v432
  %434 = vdwg.mxu0
  %435 = vmatprep.subr.bf16.mxu0 %v329
  %436 = vmatpush1.bf16.msra.mxu0 %v328
  %437 = vmatprep.subr.bf16.mxu0 %v331
  %438 = vmatpush1.bf16.msra.mxu0 %v330
  %439 = vmatprep.subr.bf16.mxu0 %v333
  %440 = vmatpush1.bf16.msra.mxu0 %v332
  %441 = vmatprep.subr.bf16.mxu0 %v335
  %442 = vmatpush1.bf16.msra.mxu0 %v334
  %443 = vmatprep.subr.bf16.mxu0 %v337
  %444 = vmatpush1.bf16.msra.mxu0 %v336
  %445 = vmatprep.subr.bf16.mxu0 %v339
  %446 = vmatpush1.bf16.msra.mxu0 %v338
  %447 = vmatprep.subr.bf16.mxu0 %v341
  %448 = vmatpush1.bf16.msra.mxu0 %v340
  %449 = vmatprep.subr.bf16.mxu0 %v343
  %450 = vmatpush1.bf16.msra.mxu0 %v342
  %451 = vmatprep.subr.bf16.mxu0 0
  %452 = vmatpush1.bf16.msra.mxu0 0
  %453 = vmatprep.subr.bf16.mxu0 0
  %454 = vmatpush1.bf16.msra.mxu0 0
  %455 = vmatprep.subr.bf16.mxu0 0
  %456 = vmatpush1.bf16.msra.mxu0 0
  %457 = vmatprep.subr.bf16.mxu0 0
  %458 = vmatpush1.bf16.msra.mxu0 0
  %459 = vmatprep.subr.bf16.mxu0 0
  %460 = vmatpush1.bf16.msra.mxu0 0
  %461 = vmatprep.subr.bf16.mxu0 0
  %462 = vmatpush1.bf16.msra.mxu0 0
  %463 = vmatprep.subr.bf16.mxu0 0
  %464 = vmatpush1.bf16.msra.mxu0 0
  %465 = vmatprep.subr.bf16.mxu0 0
  %466 = vmatpush1.bf16.msra.mxu0 0
  %467 = vmatprep.mubr.bf16.mxu0 0
  %468 = vmatmul.mubr.bf16.gmra.mrb[0].mxu0 %v103
  %v469 = vpop.f32.mrb[0].mxu0
  %v470 = vadd.f32 %v427, %v469
  %v471 = vpop.f32.mrb[0].mxu0
  %v472 = vadd.f32 %v429, %v471
  %v473 = vpop.f32.mrb[0].mxu0
  %v474 = vadd.f32 %v431, %v473
  %v475 = vpop.f32.mrb[0].mxu0
  %v476 = vadd.f32 %v433, %v475
  %477 = vdwg.mxu0
  %v478 = vadd.f32 %v470, %v474
  %v479 = vrot.slane %v478, 4
  %v480 = vadd.f32 %v478, %v479
  %v481 = vrot.slane %v480, 2
  %v482 = vadd.f32 %v480, %v481
  %v483 = vrot.slane %v482, 1
  %v484 = vadd.f32 %v482, %v483
  %v485 = vadd.f32 %v472, %v476
  %v486 = vrot.slane %v485, 4
  %v487 = vadd.f32 %v485, %v486
  %v488 = vrot.slane %v487, 2
  %v489 = vadd.f32 %v487, %v488
  %v490 = vrot.slane %v489, 1
  %v491 = vadd.f32 %v489, %v490
  %v492 = vmul.f32 %v470, %v470
  %v493 = vmul.f32 %v472, %v472
  %v494 = vmul.f32 %v474, %v474
  %v495 = vmul.f32 %v476, %v476
  %v496 = vadd.f32 %v492, %v494
  %v497 = vrot.slane %v496, 4
  %v498 = vadd.f32 %v496, %v497
  %v499 = vrot.slane %v498, 2
  %v500 = vadd.f32 %v498, %v499
  %v501 = vrot.slane %v500, 1
  %v502 = vadd.f32 %v500, %v501
  %v503 = vadd.f32 %v493, %v495
  %v504 = vrot.slane %v503, 4
  %v505 = vadd.f32 %v503, %v504
  %v506 = vrot.slane %v505, 2
  %v507 = vadd.f32 %v505, %v506
  %v508 = vrot.slane %v507, 1
  %v509 = vadd.f32 %v507, %v508
  %vm510 = vcmp.eq.s32.totalorder %v45, 0
  %v511 = vsel %vm510, %v484, %v502
  %v512 = vsel %vm510, %v491, %v509
  %v513 = vld [vmem:[%s8] sm:$0xff]
  %v514 = vld [vmem:[%s8 + $0x8] sm:$0xff]
  %v515 = vld [vmem:[%s8 + $0x10] sm:$0xff]
  %v516 = vld [vmem:[%s8 + $0x18] sm:$0xff]
  %v517 = vld [vmem:[%s8 + $0x20] sm:$0xff]
  %v518 = vld [vmem:[%s8 + $0x28] sm:$0xff]
  %v519 = vld [vmem:[%s8 + $0x30] sm:$0xff]
  %v520 = vld [vmem:[%s8 + $0x38] sm:$0xff]
  %v521 = vld [vmem:[%s8 + $0x40] sm:$0xff]
  %v522 = vld [vmem:[%s8 + $0x48] sm:$0xff]
  %v523 = vld [vmem:[%s8 + $0x50] sm:$0xff]
  %v524 = vld [vmem:[%s8 + $0x58] sm:$0xff]
  %v525 = vld [vmem:[%s8 + $0x60] sm:$0xff]
  %v526 = vld [vmem:[%s8 + $0x68] sm:$0xff]
  %v527 = vld [vmem:[%s8 + $0x70] sm:$0xff]
  %v528 = vld [vmem:[%s8 + $0x78] sm:$0xff]
  %v529 = vld [vmem:[%s8 + $0x80] sm:$0xff]
  %v530 = vld [vmem:[%s8 + $0x88] sm:$0xff]
  %v531 = vld [vmem:[%s8 + $0x90] sm:$0xff]
  %v532 = vld [vmem:[%s8 + $0x98] sm:$0xff]
  %v533 = vld [vmem:[%s8 + $0xa0] sm:$0xff]
  %v534 = vld [vmem:[%s8 + $0xa8] sm:$0xff]
  %v535 = vld [vmem:[%s8 + $0xb0] sm:$0xff]
  %v536 = vld [vmem:[%s8 + $0xb8] sm:$0xff]
  %v537 = vld [vmem:[%s8 + $0xc0] sm:$0xff]
  %v538 = vld [vmem:[%s8 + $0xc8] sm:$0xff]
  %v539 = vld [vmem:[%s8 + $0xd0] sm:$0xff]
  %v540 = vld [vmem:[%s8 + $0xd8] sm:$0xff]
  %v541 = vld [vmem:[%s8 + $0xe0] sm:$0xff]
  %v542 = vld [vmem:[%s8 + $0xe8] sm:$0xff]
  %v543 = vld [vmem:[%s8 + $0xf0] sm:$0xff]
  %v544 = vld [vmem:[%s8 + $0xf8] sm:$0xff]
  %545 = vmatprep.subr.mxu0 0.0
  %546 = vmatpush1.msra.mxu0 %v513
  %547 = vmatprep.subr.mxu0 0.0
  %548 = vmatpush1.msra.mxu0 %v514
  %549 = vmatprep.subr.mxu0 0.0
  %550 = vmatpush1.msra.mxu0 %v515
  %551 = vmatprep.subr.mxu0 0.0
  %552 = vmatpush1.msra.mxu0 %v516
  %553 = vmatprep.subr.mxu0 0.0
  %554 = vmatpush1.msra.mxu0 %v517
  %555 = vmatprep.subr.mxu0 0.0
  %556 = vmatpush1.msra.mxu0 %v518
  %557 = vmatprep.subr.mxu0 0.0
  %558 = vmatpush1.msra.mxu0 %v519
  %559 = vmatprep.subr.mxu0 0.0
  %560 = vmatpush1.msra.mxu0 %v520
  %561 = vmatprep.subr.mxu0 0.0
  %562 = vmatpush1.msra.mxu0 %v521
  %563 = vmatprep.subr.mxu0 0.0
  %564 = vmatpush1.msra.mxu0 %v522
  %565 = vmatprep.subr.mxu0 0.0
  %566 = vmatpush1.msra.mxu0 %v523
  %567 = vmatprep.subr.mxu0 0.0
  %568 = vmatpush1.msra.mxu0 %v524
  %569 = vmatprep.subr.mxu0 0.0
  %570 = vmatpush1.msra.mxu0 %v525
  %571 = vmatprep.subr.mxu0 0.0
  %572 = vmatpush1.msra.mxu0 %v526
  %573 = vmatprep.subr.mxu0 0.0
  %574 = vmatpush1.msra.mxu0 %v527
  %575 = vmatprep.subr.mxu0 0.0
  %576 = vmatpush1.msra.mxu0 %v528
  %577 = vmatprep.subr.mxu0 0.0
  %578 = vmatpush1.msra.mxu0 %v529
  %579 = vmatprep.subr.mxu0 0.0
  %580 = vmatpush1.msra.mxu0 %v530
  %581 = vmatprep.subr.mxu0 0.0
  %582 = vmatpush1.msra.mxu0 %v531
  %583 = vmatprep.subr.mxu0 0.0
  %584 = vmatpush1.msra.mxu0 %v532
  %585 = vmatprep.subr.mxu0 0.0
  %586 = vmatpush1.msra.mxu0 %v533
  %587 = vmatprep.subr.mxu0 0.0
  %588 = vmatpush1.msra.mxu0 %v534
  %589 = vmatprep.subr.mxu0 0.0
  %590 = vmatpush1.msra.mxu0 %v535
  %591 = vmatprep.subr.mxu0 0.0
  %592 = vmatpush1.msra.mxu0 %v536
  %593 = vmatprep.subr.mxu0 0.0
  %594 = vmatpush1.msra.mxu0 %v537
  %595 = vmatprep.subr.mxu0 0.0
  %596 = vmatpush1.msra.mxu0 %v538
  %597 = vmatprep.subr.mxu0 0.0
  %598 = vmatpush1.msra.mxu0 %v539
  %599 = vmatprep.subr.mxu0 0.0
  %600 = vmatpush1.msra.mxu0 %v540
  %601 = vmatprep.subr.mxu0 0.0
  %602 = vmatpush1.msra.mxu0 %v541
  %603 = vmatprep.subr.mxu0 0.0
  %604 = vmatpush1.msra.mxu0 %v542
  %605 = vmatprep.subr.mxu0 0.0
  %606 = vmatpush1.msra.mxu0 %v543
  %607 = vmatprep.subr.mxu0 0.0
  %608 = vmatpush1.msra.mxu0 %v544
  %609 = vmatprep.mubr.f32.mxu0 %v512
  %610 = vmatmul.mubr.f32.gmra.mrb[0].mxu0 %v511
  %v611 = vpop.f32.mrb[0].mxu0
  %v612 = vadd.f32 0.0, %v611
  %v613 = vpop.f32.mrb[0].mxu0
  %614 = vdwg.mxu0
  %v615 = vmul.f32 %v612, 0.001953125
  %v616 = vmul.f32 %v615, %v615
  %v618 = vrot.slane %v616, 7
  %v620 = vsub.f32 %v615, %v618
  %v621 = vadd.f32 %v620, 1e-05
  %v622 = vrsqrt.pop %v621
  %v625 = vunpack.c.l.s4 1966171168
  %v626 = vunpack.c.0.s8 %v625
  %v627 = vlaneseq
  %v628 = vshrl.u32 %v627, 7
  %v629 = vsub.s32 %v626, %v628
  %v630 = vrot.slane %v622, %v629
  %v631 = vcombine.high %v630, %v630
  %v633 = vunpack.c.l.s4 1966171168
  %v634 = vunpack.c.0.s8 %v633
  %v635 = vlaneseq
  %v636 = vshrl.u32 %v635, 7
  %v637 = vsub.s32 %v634, %v636
  %v638 = vrot.slane %v631, %v637
  %v640 = vmul.f32 %v83, %v638
  %v641 = vmul.f32 %v615, %v640
  %v642 = vsub.f32 %v84, %v641
  %v644 = vlaneseq
  %v645 = vshrl.u32 %v644, 7
  %v646 = vsub.s32 0, %v645
  %v647 = vrot.slane %v640, %v646
  %v650 = vlaneseq
  %v651 = vshrl.u32 %v650, 7
  %v652 = vsub.s32 0, %v651
  %v653 = vrot.slane %v642, %v652
  %v655 = vsel %vm510, %v647, %v653
  %v656 = vld [vmem:[%s9] sm:$0xff]
  %v657 = vld [vmem:[%s9 + $0x8] sm:$0xff]
  %vm658 = vcmask 64512
  %v660 = vsel %vm658, %v655, 0
  %662 = vmatprep.subr.mxu0 %v657
  %663 = vmatpush1.msra.mxu0 %v656
  %664 = vmatprep.subr.mxu0 0.0
  %665 = vmatpush1.msra.mxu0 0.0
  %666 = vmatprep.subr.mxu0 0.0
  %667 = vmatpush1.msra.mxu0 0.0
  %668 = vmatprep.subr.mxu0 0.0
  %669 = vmatpush1.msra.mxu0 0.0
  %670 = vmatprep.subr.mxu0 0.0
  %671 = vmatpush1.msra.mxu0 0.0
  %672 = vmatprep.subr.mxu0 0.0
  %673 = vmatpush1.msra.mxu0 0.0
  %674 = vmatprep.subr.mxu0 0.0
  %675 = vmatpush1.msra.mxu0 0.0
  %676 = vmatprep.subr.mxu0 0.0
  %677 = vmatpush1.msra.mxu0 0.0
  %678 = vmatprep.subr.mxu0 0.0
  %679 = vmatpush1.msra.mxu0 0.0
  %680 = vmatprep.subr.mxu0 0.0
  %681 = vmatpush1.msra.mxu0 0.0
  %682 = vmatprep.subr.mxu0 0.0
  %683 = vmatpush1.msra.mxu0 0.0
  %684 = vmatprep.subr.mxu0 0.0
  %685 = vmatpush1.msra.mxu0 0.0
  %686 = vmatprep.subr.mxu0 0.0
  %687 = vmatpush1.msra.mxu0 0.0
  %688 = vmatprep.subr.mxu0 0.0
  %689 = vmatpush1.msra.mxu0 0.0
  %690 = vmatprep.subr.mxu0 0.0
  %691 = vmatpush1.msra.mxu0 0.0
  %692 = vmatprep.subr.mxu0 0.0
  %693 = vmatpush1.msra.mxu0 0.0
  %694 = vmatprep.subr.mxu0 0.0
  %695 = vmatpush1.msra.mxu0 0.0
  %696 = vmatprep.subr.mxu0 0.0
  %697 = vmatpush1.msra.mxu0 0.0
  %698 = vmatprep.subr.mxu0 0.0
  %699 = vmatpush1.msra.mxu0 0.0
  %700 = vmatprep.subr.mxu0 0.0
  %701 = vmatpush1.msra.mxu0 0.0
  %702 = vmatprep.subr.mxu0 0.0
  %703 = vmatpush1.msra.mxu0 0.0
  %704 = vmatprep.subr.mxu0 0.0
  %705 = vmatpush1.msra.mxu0 0.0
  %706 = vmatprep.subr.mxu0 0.0
  %707 = vmatpush1.msra.mxu0 0.0
  %708 = vmatprep.subr.mxu0 0.0
  %709 = vmatpush1.msra.mxu0 0.0
  %710 = vmatprep.subr.mxu0 0.0
  %711 = vmatpush1.msra.mxu0 0.0
  %712 = vmatprep.subr.mxu0 0.0
  %713 = vmatpush1.msra.mxu0 0.0
  %714 = vmatprep.subr.mxu0 0.0
  %715 = vmatpush1.msra.mxu0 0.0
  %716 = vmatprep.subr.mxu0 0.0
  %717 = vmatpush1.msra.mxu0 0.0
  %718 = vmatprep.subr.mxu0 0.0
  %719 = vmatpush1.msra.mxu0 0.0
  %720 = vmatprep.subr.mxu0 0.0
  %721 = vmatpush1.msra.mxu0 0.0
  %722 = vmatprep.subr.mxu0 0.0
  %723 = vmatpush1.msra.mxu0 0.0
  %724 = vmatprep.subr.mxu0 0.0
  %725 = vmatpush1.msra.mxu0 0.0
  %726 = vmatprep.mubr.f32.mxu0 0.0
  %727 = vmatmul.mubr.f32.gmra.mrb[0].mxu0 %v660
  %v728 = vpop.f32.mrb[0].mxu0
  %v729 = vadd.f32 0.0, %v728
  %v730 = vpop.f32.mrb[0].mxu0
  %v731 = vadd.f32 0.0, %v730
  %732 = vdwg.mxu0
  %v733 = vlaneseq
  %v734 = vshrl.u32 %v733, 7
  %v735 = vsub.s32 0, %v734
  %v736 = vrot.slane %v729, %v735
  %v737 = vlaneseq
  %v738 = vshrl.u32 %v737, 7
  %v739 = vsub.s32 0, %v738
  %v740 = vrot.slane %v731, %v739
  %v741 = vmul.f32 %v470, %v736
  %v742 = vmul.f32 %v472, %v740
  %v743 = vmul.f32 %v474, %v736
  %v744 = vmul.f32 %v476, %v740
  %v745 = vlaneseq
  %v746 = vshrl.u32 %v745, 7
  %v747 = vsub.s32 1, %v746
  %v748 = vrot.slane %v729, %v747
  %v749 = vlaneseq
  %v750 = vshrl.u32 %v749, 7
  %v751 = vsub.s32 1, %v750
  %v752 = vrot.slane %v731, %v751
  %v753 = vadd.f32 %v741, %v748
  %v754 = vadd.f32 %v742, %v752
  %v755 = vadd.f32 %v743, %v748
  %v756 = vadd.f32 %v744, %v752
  %v757 = vmax.f32 %v753, 0.0
  %v758 = vmax.f32 %v754, 0.0
  %v759 = vmax.f32 %v755, 0.0
  %v760 = vmax.f32 %v756, 0.0
  %v761 = vrot.slane %v757, 7
  %v762 = vrot.slane %v758, 7
  %v763 = vrot.slane %v759, 7
  %v764 = vrot.slane %v760, 7
  %v765 = vsel %vm89, %v761, %v763
  %v766 = vsel %vm89, %v762, %v764
  %v767 = vsel %vm89, %v763, %v761
  %v768 = vsel %vm89, %v764, %v762
  %v769 = vmul.f32 %v767, %v75
  %v770 = vmul.f32 %v768, %v75
  %v771 = vmul.f32 %v765, %v76
  %v772 = vmul.f32 %v766, %v76
  %v773 = vrot.slane %v757, 1
  %v774 = vrot.slane %v758, 1
  %v775 = vrot.slane %v759, 1
  %v776 = vrot.slane %v760, 1
  %v777 = vsel %vm96, %v773, %v775
  %v778 = vsel %vm96, %v774, %v776
  %v779 = vsel %vm96, %v775, %v773
  %v780 = vsel %vm96, %v776, %v774
  %v781 = vmul.f32 %v777, %v81
  %v782 = vmul.f32 %v778, %v81
  %v783 = vmul.f32 %v779, %v82
  %v784 = vmul.f32 %v780, %v82
  %v785 = vpack.c.bf16 %v771, %v769
  %v786 = vpack.c.bf16 %v772, %v770
  %v787 = vpack.c.bf16 %v759, %v757
  %v788 = vpack.c.bf16 %v760, %v758
  %v789 = vpack.c.bf16 %v783, %v781
  %v790 = vpack.c.bf16 %v784, %v782
  %v791 = vld [vmem:[%s2] sm:$0xf]
  %v792 = vld [vmem:[%s2 + $0x4] sm:$0xf]
  %v793 = vld [vmem:[%s2 + $0x8] sm:$0xf]
  %v794 = vld [vmem:[%s2 + $0xc] sm:$0xf]
  %v795 = vld [vmem:[%s2 + $0x10] sm:$0xf]
  %v796 = vld [vmem:[%s2 + $0x14] sm:$0xf]
  %v797 = vld [vmem:[%s2 + $0x18] sm:$0xf]
  %v798 = vld [vmem:[%s2 + $0x1c] sm:$0xf]
  %v799 = vld [vmem:[%s2 + $0x20] sm:$0xf]
  %v800 = vld [vmem:[%s2 + $0x24] sm:$0xf]
  %v801 = vld [vmem:[%s2 + $0x28] sm:$0xf]
  %v802 = vld [vmem:[%s2 + $0x2c] sm:$0xf]
  %v803 = vld [vmem:[%s2 + $0x30] sm:$0xf]
  %v804 = vld [vmem:[%s2 + $0x34] sm:$0xf]
  %v805 = vld [vmem:[%s2 + $0x38] sm:$0xf]
  %v806 = vld [vmem:[%s2 + $0x3c] sm:$0xf]
  %v807 = vld [vmem:[%s2 + $0x40] sm:$0xf]
  %v808 = vld [vmem:[%s2 + $0x44] sm:$0xf]
  %v809 = vld [vmem:[%s2 + $0x48] sm:$0xf]
  %v810 = vld [vmem:[%s2 + $0x4c] sm:$0xf]
  %v811 = vld [vmem:[%s2 + $0x50] sm:$0xf]
  %v812 = vld [vmem:[%s2 + $0x54] sm:$0xf]
  %v813 = vld [vmem:[%s2 + $0x58] sm:$0xf]
  %v814 = vld [vmem:[%s2 + $0x5c] sm:$0xf]
  %v815 = vld [vmem:[%s2 + $0x60] sm:$0xf]
  %v816 = vld [vmem:[%s2 + $0x64] sm:$0xf]
  %v817 = vld [vmem:[%s2 + $0x68] sm:$0xf]
  %v818 = vld [vmem:[%s2 + $0x6c] sm:$0xf]
  %v819 = vld [vmem:[%s2 + $0x70] sm:$0xf]
  %v820 = vld [vmem:[%s2 + $0x74] sm:$0xf]
  %v821 = vld [vmem:[%s2 + $0x78] sm:$0xf]
  %v822 = vld [vmem:[%s2 + $0x7c] sm:$0xf]
  %v823 = vld [vmem:[%s2 + $0x80] sm:$0xf]
  %v824 = vld [vmem:[%s2 + $0x84] sm:$0xf]
  %v825 = vld [vmem:[%s2 + $0x88] sm:$0xf]
  %v826 = vld [vmem:[%s2 + $0x8c] sm:$0xf]
  %v827 = vld [vmem:[%s2 + $0x90] sm:$0xf]
  %v828 = vld [vmem:[%s2 + $0x94] sm:$0xf]
  %v829 = vld [vmem:[%s2 + $0x98] sm:$0xf]
  %v830 = vld [vmem:[%s2 + $0x9c] sm:$0xf]
  %v831 = vld [vmem:[%s2 + $0xa0] sm:$0xf]
  %v832 = vld [vmem:[%s2 + $0xa4] sm:$0xf]
  %v833 = vld [vmem:[%s2 + $0xa8] sm:$0xf]
  %v834 = vld [vmem:[%s2 + $0xac] sm:$0xf]
  %v835 = vld [vmem:[%s2 + $0xb0] sm:$0xf]
  %v836 = vld [vmem:[%s2 + $0xb4] sm:$0xf]
  %v837 = vld [vmem:[%s2 + $0xb8] sm:$0xf]
  %v838 = vld [vmem:[%s2 + $0xbc] sm:$0xf]
  %v839 = vld [vmem:[%s2 + $0xc0] sm:$0xf]
  %v840 = vld [vmem:[%s2 + $0xc4] sm:$0xf]
  %v841 = vld [vmem:[%s2 + $0xc8] sm:$0xf]
  %v842 = vld [vmem:[%s2 + $0xcc] sm:$0xf]
  %v843 = vld [vmem:[%s2 + $0xd0] sm:$0xf]
  %v844 = vld [vmem:[%s2 + $0xd4] sm:$0xf]
  %v845 = vld [vmem:[%s2 + $0xd8] sm:$0xf]
  %v846 = vld [vmem:[%s2 + $0xdc] sm:$0xf]
  %v847 = vld [vmem:[%s2 + $0xe0] sm:$0xf]
  %v848 = vld [vmem:[%s2 + $0xe4] sm:$0xf]
  %v849 = vld [vmem:[%s2 + $0xe8] sm:$0xf]
  %v850 = vld [vmem:[%s2 + $0xec] sm:$0xf]
  %v851 = vld [vmem:[%s2 + $0xf0] sm:$0xf]
  %v852 = vld [vmem:[%s2 + $0xf4] sm:$0xf]
  %v853 = vld [vmem:[%s2 + $0xf8] sm:$0xf]
  %v854 = vld [vmem:[%s2 + $0xfc] sm:$0xf]
  %v855 = vld [vmem:[%s2 + $0x100] sm:$0xf]
  %v856 = vld [vmem:[%s2 + $0x104] sm:$0xf]
  %v857 = vld [vmem:[%s2 + $0x108] sm:$0xf]
  %v858 = vld [vmem:[%s2 + $0x10c] sm:$0xf]
  %v859 = vld [vmem:[%s2 + $0x110] sm:$0xf]
  %v860 = vld [vmem:[%s2 + $0x114] sm:$0xf]
  %v861 = vld [vmem:[%s2 + $0x118] sm:$0xf]
  %v862 = vld [vmem:[%s2 + $0x11c] sm:$0xf]
  %v863 = vld [vmem:[%s2 + $0x120] sm:$0xf]
  %v864 = vld [vmem:[%s2 + $0x124] sm:$0xf]
  %v865 = vld [vmem:[%s2 + $0x128] sm:$0xf]
  %v866 = vld [vmem:[%s2 + $0x12c] sm:$0xf]
  %v867 = vld [vmem:[%s2 + $0x130] sm:$0xf]
  %v868 = vld [vmem:[%s2 + $0x134] sm:$0xf]
  %v869 = vld [vmem:[%s2 + $0x138] sm:$0xf]
  %v870 = vld [vmem:[%s2 + $0x13c] sm:$0xf]
  %v871 = vld [vmem:[%s2 + $0x140] sm:$0xf]
  %v872 = vld [vmem:[%s2 + $0x144] sm:$0xf]
  %v873 = vld [vmem:[%s2 + $0x148] sm:$0xf]
  %v874 = vld [vmem:[%s2 + $0x14c] sm:$0xf]
  %v875 = vld [vmem:[%s2 + $0x150] sm:$0xf]
  %v876 = vld [vmem:[%s2 + $0x154] sm:$0xf]
  %v877 = vld [vmem:[%s2 + $0x158] sm:$0xf]
  %v878 = vld [vmem:[%s2 + $0x15c] sm:$0xf]
  %v879 = vld [vmem:[%s2 + $0x160] sm:$0xf]
  %v880 = vld [vmem:[%s2 + $0x164] sm:$0xf]
  %v881 = vld [vmem:[%s2 + $0x168] sm:$0xf]
  %v882 = vld [vmem:[%s2 + $0x16c] sm:$0xf]
  %v883 = vld [vmem:[%s2 + $0x170] sm:$0xf]
  %v884 = vld [vmem:[%s2 + $0x174] sm:$0xf]
  %v885 = vld [vmem:[%s2 + $0x178] sm:$0xf]
  %v886 = vld [vmem:[%s2 + $0x17c] sm:$0xf]
  %v983 = vunpack.c.l.b16 %v791
  %v984 = vunpack.c.l.b16 %v792
  %v985 = vunpack.c.l.b16 %v793
  %v986 = vunpack.c.l.b16 %v794
  %v987 = vunpack.c.l.b16 %v795
  %v988 = vunpack.c.l.b16 %v796
  %v989 = vunpack.c.l.b16 %v797
  %v990 = vunpack.c.l.b16 %v798
  %v991 = vunpack.c.l.b16 %v799
  %v992 = vunpack.c.l.b16 %v800
  %v993 = vunpack.c.l.b16 %v801
  %v994 = vunpack.c.l.b16 %v802
  %v995 = vunpack.c.l.b16 %v803
  %v996 = vunpack.c.l.b16 %v804
  %v997 = vunpack.c.l.b16 %v805
  %v998 = vunpack.c.l.b16 %v806
  %v999 = vunpack.c.l.b16 %v807
  %v1000 = vunpack.c.l.b16 %v808
  %v1001 = vunpack.c.l.b16 %v809
  %v1002 = vunpack.c.l.b16 %v810
  %v1003 = vunpack.c.l.b16 %v811
  %v1004 = vunpack.c.l.b16 %v812
  %v1005 = vunpack.c.l.b16 %v813
  %v1006 = vunpack.c.l.b16 %v814
  %v1007 = vunpack.c.l.b16 %v815
  %v1008 = vunpack.c.l.b16 %v816
  %v1009 = vunpack.c.l.b16 %v817
  %v1010 = vunpack.c.l.b16 %v818
  %v1011 = vunpack.c.l.b16 %v819
  %v1012 = vunpack.c.l.b16 %v820
  %v1013 = vunpack.c.l.b16 %v821
  %v1014 = vunpack.c.l.b16 %v822
  %v1015 = vunpack.c.l.b16 %v823
  %v1016 = vunpack.c.l.b16 %v824
  %v1017 = vunpack.c.l.b16 %v825
  %v1018 = vunpack.c.l.b16 %v826
  %v1019 = vunpack.c.l.b16 %v827
  %v1020 = vunpack.c.l.b16 %v828
  %v1021 = vunpack.c.l.b16 %v829
  %v1022 = vunpack.c.l.b16 %v830
  %v1023 = vunpack.c.l.b16 %v831
  %v1024 = vunpack.c.l.b16 %v832
  %v1025 = vunpack.c.l.b16 %v833
  %v1026 = vunpack.c.l.b16 %v834
  %v1027 = vunpack.c.l.b16 %v835
  %v1028 = vunpack.c.l.b16 %v836
  %v1029 = vunpack.c.l.b16 %v837
  %v1030 = vunpack.c.l.b16 %v838
  %v1031 = vunpack.c.l.b16 %v839
  %v1032 = vunpack.c.l.b16 %v840
  %v1033 = vunpack.c.l.b16 %v841
  %v1034 = vunpack.c.l.b16 %v842
  %v1035 = vunpack.c.l.b16 %v843
  %v1036 = vunpack.c.l.b16 %v844
  %v1037 = vunpack.c.l.b16 %v845
  %v1038 = vunpack.c.l.b16 %v846
  %v1039 = vunpack.c.l.b16 %v847
  %v1040 = vunpack.c.l.b16 %v848
  %v1041 = vunpack.c.l.b16 %v849
  %v1042 = vunpack.c.l.b16 %v850
  %v1043 = vunpack.c.l.b16 %v851
  %v1044 = vunpack.c.l.b16 %v852
  %v1045 = vunpack.c.l.b16 %v853
  %v1046 = vunpack.c.l.b16 %v854
  %v1047 = vunpack.c.l.b16 %v855
  %v1048 = vunpack.c.l.b16 %v856
  %v1049 = vunpack.c.l.b16 %v857
  %v1050 = vunpack.c.l.b16 %v858
  %v1051 = vunpack.c.l.b16 %v859
  %v1052 = vunpack.c.l.b16 %v860
  %v1053 = vunpack.c.l.b16 %v861
  %v1054 = vunpack.c.l.b16 %v862
  %v1055 = vunpack.c.l.b16 %v863
  %v1056 = vunpack.c.l.b16 %v864
  %v1057 = vunpack.c.l.b16 %v865
  %v1058 = vunpack.c.l.b16 %v866
  %v1059 = vunpack.c.l.b16 %v867
  %v1060 = vunpack.c.l.b16 %v868
  %v1061 = vunpack.c.l.b16 %v869
  %v1062 = vunpack.c.l.b16 %v870
  %v1063 = vunpack.c.l.b16 %v871
  %v1064 = vunpack.c.l.b16 %v872
  %v1065 = vunpack.c.l.b16 %v873
  %v1066 = vunpack.c.l.b16 %v874
  %v1067 = vunpack.c.l.b16 %v875
  %v1068 = vunpack.c.l.b16 %v876
  %v1069 = vunpack.c.l.b16 %v877
  %v1070 = vunpack.c.l.b16 %v878
  %v1071 = vunpack.c.l.b16 %v879
  %v1072 = vunpack.c.l.b16 %v880
  %v1073 = vunpack.c.l.b16 %v881
  %v1074 = vunpack.c.l.b16 %v882
  %v1075 = vunpack.c.l.b16 %v883
  %v1076 = vunpack.c.l.b16 %v884
  %v1077 = vunpack.c.l.b16 %v885
  %v1078 = vunpack.c.l.b16 %v886
  %v1079 = vpack.c.b16 %v984, %v983
  %v1080 = vpack.c.b16 %v986, %v985
  %v1081 = vpack.c.b16 %v988, %v987
  %v1082 = vpack.c.b16 %v990, %v989
  %v1083 = vpack.c.b16 %v992, %v991
  %v1084 = vpack.c.b16 %v994, %v993
  %v1085 = vpack.c.b16 %v996, %v995
  %v1086 = vpack.c.b16 %v998, %v997
  %v1087 = vpack.c.b16 %v1000, %v999
  %v1088 = vpack.c.b16 %v1002, %v1001
  %v1089 = vpack.c.b16 %v1004, %v1003
  %v1090 = vpack.c.b16 %v1006, %v1005
  %v1091 = vpack.c.b16 %v1008, %v1007
  %v1092 = vpack.c.b16 %v1010, %v1009
  %v1093 = vpack.c.b16 %v1012, %v1011
  %v1094 = vpack.c.b16 %v1014, %v1013
  %v1095 = vpack.c.b16 %v1016, %v1015
  %v1096 = vpack.c.b16 %v1018, %v1017
  %v1097 = vpack.c.b16 %v1020, %v1019
  %v1098 = vpack.c.b16 %v1022, %v1021
  %v1099 = vpack.c.b16 %v1024, %v1023
  %v1100 = vpack.c.b16 %v1026, %v1025
  %v1101 = vpack.c.b16 %v1028, %v1027
  %v1102 = vpack.c.b16 %v1030, %v1029
  %v1103 = vpack.c.b16 %v1032, %v1031
  %v1104 = vpack.c.b16 %v1034, %v1033
  %v1105 = vpack.c.b16 %v1036, %v1035
  %v1106 = vpack.c.b16 %v1038, %v1037
  %v1107 = vpack.c.b16 %v1040, %v1039
  %v1108 = vpack.c.b16 %v1042, %v1041
  %v1109 = vpack.c.b16 %v1044, %v1043
  %v1110 = vpack.c.b16 %v1046, %v1045
  %v1111 = vpack.c.b16 %v1048, %v1047
  %v1112 = vpack.c.b16 %v1050, %v1049
  %v1113 = vpack.c.b16 %v1052, %v1051
  %v1114 = vpack.c.b16 %v1054, %v1053
  %v1115 = vpack.c.b16 %v1056, %v1055
  %v1116 = vpack.c.b16 %v1058, %v1057
  %v1117 = vpack.c.b16 %v1060, %v1059
  %v1118 = vpack.c.b16 %v1062, %v1061
  %v1119 = vpack.c.b16 %v1064, %v1063
  %v1120 = vpack.c.b16 %v1066, %v1065
  %v1121 = vpack.c.b16 %v1068, %v1067
  %v1122 = vpack.c.b16 %v1070, %v1069
  %v1123 = vpack.c.b16 %v1072, %v1071
  %v1124 = vpack.c.b16 %v1074, %v1073
  %v1125 = vpack.c.b16 %v1076, %v1075
  %v1126 = vpack.c.b16 %v1078, %v1077
  %1175 = vmatprep.subr.bf16.mxu0 0
  %1176 = vmatpush1.bf16.msra.mxu0 %v1079
  %1177 = vmatprep.subr.bf16.mxu0 0
  %1178 = vmatpush1.bf16.msra.mxu0 %v1080
  %1179 = vmatprep.subr.bf16.mxu0 0
  %1180 = vmatpush1.bf16.msra.mxu0 %v1081
  %1181 = vmatprep.subr.bf16.mxu0 0
  %1182 = vmatpush1.bf16.msra.mxu0 %v1082
  %1183 = vmatprep.subr.bf16.mxu0 0
  %1184 = vmatpush1.bf16.msra.mxu0 %v1083
  %1185 = vmatprep.subr.bf16.mxu0 0
  %1186 = vmatpush1.bf16.msra.mxu0 %v1084
  %1187 = vmatprep.subr.bf16.mxu0 0
  %1188 = vmatpush1.bf16.msra.mxu0 %v1085
  %1189 = vmatprep.subr.bf16.mxu0 0
  %1190 = vmatpush1.bf16.msra.mxu0 %v1086
  %1191 = vmatprep.subr.bf16.mxu0 0
  %1192 = vmatpush1.bf16.msra.mxu0 %v1087
  %1193 = vmatprep.subr.bf16.mxu0 0
  %1194 = vmatpush1.bf16.msra.mxu0 %v1088
  %1195 = vmatprep.subr.bf16.mxu0 0
  %1196 = vmatpush1.bf16.msra.mxu0 %v1089
  %1197 = vmatprep.subr.bf16.mxu0 0
  %1198 = vmatpush1.bf16.msra.mxu0 %v1090
  %1199 = vmatprep.subr.bf16.mxu0 0
  %1200 = vmatpush1.bf16.msra.mxu0 %v1091
  %1201 = vmatprep.subr.bf16.mxu0 0
  %1202 = vmatpush1.bf16.msra.mxu0 %v1092
  %1203 = vmatprep.subr.bf16.mxu0 0
  %1204 = vmatpush1.bf16.msra.mxu0 %v1093
  %1205 = vmatprep.subr.bf16.mxu0 0
  %1206 = vmatpush1.bf16.msra.mxu0 %v1094
  %1207 = vmatprep.mubr.bf16.mxu0 %v786
  %1208 = vmatmul.mubr.bf16.gmra.mrb[0].mxu0 %v785
  %v1209 = vpop.f32.mrb[0].mxu0
  %v1210 = vadd.f32 0.0, %v1209
  %v1211 = vpop.f32.mrb[0].mxu0
  %v1212 = vpop.f32.mrb[0].mxu0
  %v1213 = vadd.f32 0.0, %v1212
  %v1214 = vpop.f32.mrb[0].mxu0
  %1215 = vdwg.mxu0
  %1216 = vmatprep.subr.bf16.mxu0 0
  %1217 = vmatpush1.bf16.msra.mxu0 %v1095
  %1218 = vmatprep.subr.bf16.mxu0 0
  %1219 = vmatpush1.bf16.msra.mxu0 %v1096
  %1220 = vmatprep.subr.bf16.mxu0 0
  %1221 = vmatpush1.bf16.msra.mxu0 %v1097
  %1222 = vmatprep.subr.bf16.mxu0 0
  %1223 = vmatpush1.bf16.msra.mxu0 %v1098
  %1224 = vmatprep.subr.bf16.mxu0 0
  %1225 = vmatpush1.bf16.msra.mxu0 %v1099
  %1226 = vmatprep.subr.bf16.mxu0 0
  %1227 = vmatpush1.bf16.msra.mxu0 %v1100
  %1228 = vmatprep.subr.bf16.mxu0 0
  %1229 = vmatpush1.bf16.msra.mxu0 %v1101
  %1230 = vmatprep.subr.bf16.mxu0 0
  %1231 = vmatpush1.bf16.msra.mxu0 %v1102
  %1232 = vmatprep.subr.bf16.mxu0 0
  %1233 = vmatpush1.bf16.msra.mxu0 %v1103
  %1234 = vmatprep.subr.bf16.mxu0 0
  %1235 = vmatpush1.bf16.msra.mxu0 %v1104
  %1236 = vmatprep.subr.bf16.mxu0 0
  %1237 = vmatpush1.bf16.msra.mxu0 %v1105
  %1238 = vmatprep.subr.bf16.mxu0 0
  %1239 = vmatpush1.bf16.msra.mxu0 %v1106
  %1240 = vmatprep.subr.bf16.mxu0 0
  %1241 = vmatpush1.bf16.msra.mxu0 %v1107
  %1242 = vmatprep.subr.bf16.mxu0 0
  %1243 = vmatpush1.bf16.msra.mxu0 %v1108
  %1244 = vmatprep.subr.bf16.mxu0 0
  %1245 = vmatpush1.bf16.msra.mxu0 %v1109
  %1246 = vmatprep.subr.bf16.mxu0 0
  %1247 = vmatpush1.bf16.msra.mxu0 %v1110
  %1248 = vmatprep.mubr.bf16.mxu0 %v788
  %1249 = vmatmul.mubr.bf16.gmra.mrb[0].mxu0 %v787
  %v1250 = vpop.f32.mrb[0].mxu0
  %v1251 = vadd.f32 %v1210, %v1250
  %v1252 = vpop.f32.mrb[0].mxu0
  %v1253 = vpop.f32.mrb[0].mxu0
  %v1254 = vadd.f32 %v1213, %v1253
  %v1255 = vpop.f32.mrb[0].mxu0
  %1256 = vdwg.mxu0
  %1257 = vmatprep.subr.bf16.mxu0 0
  %1258 = vmatpush1.bf16.msra.mxu0 %v1111
  %1259 = vmatprep.subr.bf16.mxu0 0
  %1260 = vmatpush1.bf16.msra.mxu0 %v1112
  %1261 = vmatprep.subr.bf16.mxu0 0
  %1262 = vmatpush1.bf16.msra.mxu0 %v1113
  %1263 = vmatprep.subr.bf16.mxu0 0
  %1264 = vmatpush1.bf16.msra.mxu0 %v1114
  %1265 = vmatprep.subr.bf16.mxu0 0
  %1266 = vmatpush1.bf16.msra.mxu0 %v1115
  %1267 = vmatprep.subr.bf16.mxu0 0
  %1268 = vmatpush1.bf16.msra.mxu0 %v1116
  %1269 = vmatprep.subr.bf16.mxu0 0
  %1270 = vmatpush1.bf16.msra.mxu0 %v1117
  %1271 = vmatprep.subr.bf16.mxu0 0
  %1272 = vmatpush1.bf16.msra.mxu0 %v1118
  %1273 = vmatprep.subr.bf16.mxu0 0
  %1274 = vmatpush1.bf16.msra.mxu0 %v1119
  %1275 = vmatprep.subr.bf16.mxu0 0
  %1276 = vmatpush1.bf16.msra.mxu0 %v1120
  %1277 = vmatprep.subr.bf16.mxu0 0
  %1278 = vmatpush1.bf16.msra.mxu0 %v1121
  %1279 = vmatprep.subr.bf16.mxu0 0
  %1280 = vmatpush1.bf16.msra.mxu0 %v1122
  %1281 = vmatprep.subr.bf16.mxu0 0
  %1282 = vmatpush1.bf16.msra.mxu0 %v1123
  %1283 = vmatprep.subr.bf16.mxu0 0
  %1284 = vmatpush1.bf16.msra.mxu0 %v1124
  %1285 = vmatprep.subr.bf16.mxu0 0
  %1286 = vmatpush1.bf16.msra.mxu0 %v1125
  %1287 = vmatprep.subr.bf16.mxu0 0
  %1288 = vmatpush1.bf16.msra.mxu0 %v1126
  %1289 = vmatprep.mubr.bf16.mxu0 %v790
  %1290 = vmatmul.mubr.bf16.gmra.mrb[0].mxu0 %v789
  %v1291 = vpop.f32.mrb[0].mxu0
  %v1292 = vadd.f32 %v1251, %v1291
  %v1293 = vpop.f32.mrb[0].mxu0
  %v1294 = vpop.f32.mrb[0].mxu0
  %v1295 = vadd.f32 %v1254, %v1294
  %v1296 = vpop.f32.mrb[0].mxu0
  %1297 = vdwg.mxu0
  %v1298 = vld [vmem:[%s3] sm:$0xf]
  %v1299 = vld [vmem:[%s3 + $0x4] sm:$0xf]
  %v1300 = vld [vmem:[%s3 + $0x8] sm:$0xf]
  %v1301 = vld [vmem:[%s3 + $0xc] sm:$0xf]
  %v1302 = vld [vmem:[%s3 + $0x10] sm:$0xf]
  %v1303 = vld [vmem:[%s3 + $0x14] sm:$0xf]
  %v1304 = vld [vmem:[%s3 + $0x18] sm:$0xf]
  %v1305 = vld [vmem:[%s3 + $0x1c] sm:$0xf]
  %v1306 = vld [vmem:[%s3 + $0x20] sm:$0xf]
  %v1307 = vld [vmem:[%s3 + $0x24] sm:$0xf]
  %v1308 = vld [vmem:[%s3 + $0x28] sm:$0xf]
  %v1309 = vld [vmem:[%s3 + $0x2c] sm:$0xf]
  %v1310 = vld [vmem:[%s3 + $0x30] sm:$0xf]
  %v1311 = vld [vmem:[%s3 + $0x34] sm:$0xf]
  %v1312 = vld [vmem:[%s3 + $0x38] sm:$0xf]
  %v1313 = vld [vmem:[%s3 + $0x3c] sm:$0xf]
  %v1330 = vunpack.c.l.b16 %v1298
  %v1331 = vunpack.c.l.b16 %v1299
  %v1332 = vunpack.c.l.b16 %v1300
  %v1333 = vunpack.c.l.b16 %v1301
  %v1334 = vunpack.c.l.b16 %v1302
  %v1335 = vunpack.c.l.b16 %v1303
  %v1336 = vunpack.c.l.b16 %v1304
  %v1337 = vunpack.c.l.b16 %v1305
  %v1338 = vunpack.c.l.b16 %v1306
  %v1339 = vunpack.c.l.b16 %v1307
  %v1340 = vunpack.c.l.b16 %v1308
  %v1341 = vunpack.c.l.b16 %v1309
  %v1342 = vunpack.c.l.b16 %v1310
  %v1343 = vunpack.c.l.b16 %v1311
  %v1344 = vunpack.c.l.b16 %v1312
  %v1345 = vunpack.c.l.b16 %v1313
  %v1346 = vpack.c.b16 %v1331, %v1330
  %v1347 = vpack.c.b16 %v1333, %v1332
  %v1348 = vpack.c.b16 %v1335, %v1334
  %v1349 = vpack.c.b16 %v1337, %v1336
  %v1350 = vpack.c.b16 %v1339, %v1338
  %v1351 = vpack.c.b16 %v1341, %v1340
  %v1352 = vpack.c.b16 %v1343, %v1342
  %v1353 = vpack.c.b16 %v1345, %v1344
  %1362 = vmatprep.subr.bf16.mxu0 0
  %1363 = vmatpush1.bf16.msra.mxu0 %v1346
  %1364 = vmatprep.subr.bf16.mxu0 0
  %1365 = vmatpush1.bf16.msra.mxu0 %v1347
  %1366 = vmatprep.subr.bf16.mxu0 0
  %1367 = vmatpush1.bf16.msra.mxu0 %v1348
  %1368 = vmatprep.subr.bf16.mxu0 0
  %1369 = vmatpush1.bf16.msra.mxu0 %v1349
  %1370 = vmatprep.subr.bf16.mxu0 0
  %1371 = vmatpush1.bf16.msra.mxu0 %v1350
  %1372 = vmatprep.subr.bf16.mxu0 0
  %1373 = vmatpush1.bf16.msra.mxu0 %v1351
  %1374 = vmatprep.subr.bf16.mxu0 0
  %1375 = vmatpush1.bf16.msra.mxu0 %v1352
  %1376 = vmatprep.subr.bf16.mxu0 0
  %1377 = vmatpush1.bf16.msra.mxu0 %v1353
  %1378 = vmatprep.subr.bf16.mxu0 0
  %1379 = vmatpush1.bf16.msra.mxu0 0
  %1380 = vmatprep.subr.bf16.mxu0 0
  %1381 = vmatpush1.bf16.msra.mxu0 0
  %1382 = vmatprep.subr.bf16.mxu0 0
  %1383 = vmatpush1.bf16.msra.mxu0 0
  %1384 = vmatprep.subr.bf16.mxu0 0
  %1385 = vmatpush1.bf16.msra.mxu0 0
  %1386 = vmatprep.subr.bf16.mxu0 0
  %1387 = vmatpush1.bf16.msra.mxu0 0
  %1388 = vmatprep.subr.bf16.mxu0 0
  %1389 = vmatpush1.bf16.msra.mxu0 0
  %1390 = vmatprep.subr.bf16.mxu0 0
  %1391 = vmatpush1.bf16.msra.mxu0 0
  %1392 = vmatprep.subr.bf16.mxu0 0
  %1393 = vmatpush1.bf16.msra.mxu0 0
  %1394 = vmatprep.mubr.bf16.mxu0 0
  %1395 = vmatmul.mubr.bf16.gmra.mrb[0].mxu0 %v102
  %v1396 = vpop.f32.mrb[0].mxu0
  %v1397 = vadd.f32 0.0, %v1396
  %v1398 = vpop.f32.mrb[0].mxu0
  %v1399 = vpop.f32.mrb[0].mxu0
  %v1400 = vadd.f32 0.0, %v1399
  %v1401 = vpop.f32.mrb[0].mxu0
  %1402 = vdwg.mxu0
  %v1403 = vadd.f32 %v1292, %v1295
  %v1404 = vrot.slane %v1403, 4
  %v1405 = vadd.f32 %v1403, %v1404
  %v1406 = vrot.slane %v1405, 2
  %v1407 = vadd.f32 %v1405, %v1406
  %v1408 = vrot.slane %v1407, 1
  %v1409 = vadd.f32 %v1407, %v1408
  %v1410 = vmul.f32 %v1292, %v1292
  %v1411 = vmul.f32 %v1295, %v1295
  %v1412 = vadd.f32 %v1410, %v1411
  %v1413 = vrot.slane %v1412, 4
  %v1414 = vadd.f32 %v1412, %v1413
  %v1415 = vrot.slane %v1414, 2
  %v1416 = vadd.f32 %v1414, %v1415
  %v1417 = vrot.slane %v1416, 1
  %v1418 = vadd.f32 %v1416, %v1417
  %v1419 = vadd.f32 %v1397, %v1400
  %v1420 = vrot.slane %v1419, 4
  %v1421 = vadd.f32 %v1419, %v1420
  %v1422 = vrot.slane %v1421, 2
  %v1423 = vadd.f32 %v1421, %v1422
  %v1424 = vrot.slane %v1423, 1
  %v1425 = vadd.f32 %v1423, %v1424
  %v1426 = vmul.f32 %v1397, %v1397
  %v1427 = vmul.f32 %v1400, %v1400
  %v1428 = vadd.f32 %v1426, %v1427
  %v1429 = vrot.slane %v1428, 4
  %v1430 = vadd.f32 %v1428, %v1429
  %v1431 = vrot.slane %v1430, 2
  %v1432 = vadd.f32 %v1430, %v1431
  %v1433 = vrot.slane %v1432, 1
  %v1434 = vadd.f32 %v1432, %v1433
  %vm1435 = vcmp.eq.s32.totalorder %v45, 2
  %v1436 = vsel %vm1435, %v1425, %v1434
  %vm1437 = vcmp.eq.s32.totalorder %v45, 1
  %v1438 = vsel %vm1437, %v1418, %v1436
  %v1439 = vsel %vm510, %v1409, %v1438
  %v1440 = vld [vmem:[%s10] sm:$0xff]
  %v1441 = vld [vmem:[%s10 + $0x8] sm:$0xff]
  %v1442 = vld [vmem:[%s10 + $0x10] sm:$0xff]
  %v1443 = vld [vmem:[%s10 + $0x18] sm:$0xff]
  %v1444 = vld [vmem:[%s10 + $0x20] sm:$0xff]
  %v1445 = vld [vmem:[%s10 + $0x28] sm:$0xff]
  %v1446 = vld [vmem:[%s10 + $0x30] sm:$0xff]
  %v1447 = vld [vmem:[%s10 + $0x38] sm:$0xff]
  %v1448 = vld [vmem:[%s10 + $0x40] sm:$0xff]
  %v1449 = vld [vmem:[%s10 + $0x48] sm:$0xff]
  %v1450 = vld [vmem:[%s10 + $0x50] sm:$0xff]
  %v1451 = vld [vmem:[%s10 + $0x58] sm:$0xff]
  %v1452 = vld [vmem:[%s10 + $0x60] sm:$0xff]
  %v1453 = vld [vmem:[%s10 + $0x68] sm:$0xff]
  %v1454 = vld [vmem:[%s10 + $0x70] sm:$0xff]
  %v1455 = vld [vmem:[%s10 + $0x78] sm:$0xff]
  %1456 = vmatprep.subr.mxu0 0.0
  %1457 = vmatpush1.msra.mxu0 %v1440
  %1458 = vmatprep.subr.mxu0 0.0
  %1459 = vmatpush1.msra.mxu0 %v1441
  %1460 = vmatprep.subr.mxu0 0.0
  %1461 = vmatpush1.msra.mxu0 %v1442
  %1462 = vmatprep.subr.mxu0 0.0
  %1463 = vmatpush1.msra.mxu0 %v1443
  %1464 = vmatprep.subr.mxu0 0.0
  %1465 = vmatpush1.msra.mxu0 %v1444
  %1466 = vmatprep.subr.mxu0 0.0
  %1467 = vmatpush1.msra.mxu0 %v1445
  %1468 = vmatprep.subr.mxu0 0.0
  %1469 = vmatpush1.msra.mxu0 %v1446
  %1470 = vmatprep.subr.mxu0 0.0
  %1471 = vmatpush1.msra.mxu0 %v1447
  %1472 = vmatprep.subr.mxu0 0.0
  %1473 = vmatpush1.msra.mxu0 %v1448
  %1474 = vmatprep.subr.mxu0 0.0
  %1475 = vmatpush1.msra.mxu0 %v1449
  %1476 = vmatprep.subr.mxu0 0.0
  %1477 = vmatpush1.msra.mxu0 %v1450
  %1478 = vmatprep.subr.mxu0 0.0
  %1479 = vmatpush1.msra.mxu0 %v1451
  %1480 = vmatprep.subr.mxu0 0.0
  %1481 = vmatpush1.msra.mxu0 %v1452
  %1482 = vmatprep.subr.mxu0 0.0
  %1483 = vmatpush1.msra.mxu0 %v1453
  %1484 = vmatprep.subr.mxu0 0.0
  %1485 = vmatpush1.msra.mxu0 %v1454
  %1486 = vmatprep.subr.mxu0 0.0
  %1487 = vmatpush1.msra.mxu0 %v1455
  %1488 = vmatprep.subr.mxu0 0.0
  %1489 = vmatpush1.msra.mxu0 0.0
  %1490 = vmatprep.subr.mxu0 0.0
  %1491 = vmatpush1.msra.mxu0 0.0
  %1492 = vmatprep.subr.mxu0 0.0
  %1493 = vmatpush1.msra.mxu0 0.0
  %1494 = vmatprep.subr.mxu0 0.0
  %1495 = vmatpush1.msra.mxu0 0.0
  %1496 = vmatprep.subr.mxu0 0.0
  %1497 = vmatpush1.msra.mxu0 0.0
  %1498 = vmatprep.subr.mxu0 0.0
  %1499 = vmatpush1.msra.mxu0 0.0
  %1500 = vmatprep.subr.mxu0 0.0
  %1501 = vmatpush1.msra.mxu0 0.0
  %1502 = vmatprep.subr.mxu0 0.0
  %1503 = vmatpush1.msra.mxu0 0.0
  %1504 = vmatprep.subr.mxu0 0.0
  %1505 = vmatpush1.msra.mxu0 0.0
  %1506 = vmatprep.subr.mxu0 0.0
  %1507 = vmatpush1.msra.mxu0 0.0
  %1508 = vmatprep.subr.mxu0 0.0
  %1509 = vmatpush1.msra.mxu0 0.0
  %1510 = vmatprep.subr.mxu0 0.0
  %1511 = vmatpush1.msra.mxu0 0.0
  %1512 = vmatprep.subr.mxu0 0.0
  %1513 = vmatpush1.msra.mxu0 0.0
  %1514 = vmatprep.subr.mxu0 0.0
  %1515 = vmatpush1.msra.mxu0 0.0
  %1516 = vmatprep.subr.mxu0 0.0
  %1517 = vmatpush1.msra.mxu0 0.0
  %1518 = vmatprep.subr.mxu0 0.0
  %1519 = vmatpush1.msra.mxu0 0.0
  %1520 = vmatprep.mubr.f32.mxu0 0.0
  %1521 = vmatmul.mubr.f32.gmra.mrb[0].mxu0 %v1439
  %v1522 = vpop.f32.mrb[0].mxu0
  %v1523 = vadd.f32 0.0, %v1522
  %v1524 = vpop.f32.mrb[0].mxu0
  %1525 = vdwg.mxu0
  %v1526 = vmul.f32 %v1523, 0.001953125
  %v1527 = vmul.f32 %v1526, %v1526
  %v1529 = vrot.slane %v1527, 7
  %v1531 = vsub.f32 %v1526, %v1529
  %v1532 = vadd.f32 %v1531, 1e-05
  %v1533 = vrsqrt.pop %v1532
  %v1536 = vunpack.c.l.s4 1966171168
  %v1537 = vunpack.c.0.s8 %v1536
  %v1538 = vlaneseq
  %v1539 = vshrl.u32 %v1538, 7
  %v1540 = vsub.s32 %v1537, %v1539
  %v1541 = vrot.slane %v1533, %v1540
  %v1542 = vcombine.high %v1541, %v1541
  %v1544 = vunpack.c.l.s4 1966171168
  %v1545 = vunpack.c.0.s8 %v1544
  %v1546 = vlaneseq
  %v1547 = vshrl.u32 %v1546, 7
  %v1548 = vsub.s32 %v1545, %v1547
  %v1549 = vrot.slane %v1542, %v1548
  %v1551 = vmul.f32 %v85, %v1549
  %v1552 = vmul.f32 %v1526, %v1551
  %v1553 = vsub.f32 %v86, %v1552
  %v1554 = vcombine.high %v1549, %v1549
  %v1556 = vmul.f32 %v85, %v1554
  %v1558 = vlaneseq
  %v1559 = vshrl.u32 %v1558, 7
  %v1560 = vsub.s32 0, %v1559
  %v1561 = vrot.slane %v1556, %v1560
  %v1563 = vmul.f32 %v1526, %v1561
  %v1566 = vunpack.c.l.s4 1966171168
  %v1567 = vunpack.c.0.s8 %v1566
  %v1568 = vlaneseq
  %v1569 = vshrl.u32 %v1568, 7
  %v1570 = vsub.s32 %v1567, %v1569
  %v1571 = vrot.slane %v1563, %v1570
  %v1573 = vunpack.c.l.s4 1966171168
  %v1574 = vunpack.c.0.s8 %v1573
  %v1575 = vlaneseq
  %v1576 = vshrl.u32 %v1575, 7
  %v1577 = vsub.s32 %v1574, %v1576
  %v1578 = vrot.slane %v1571, %v1577
  %v1579 = vcombine.high %v1578, %v1578
  %v1581 = vsub.f32 %v86, %v1579
  %v1583 = vlaneseq
  %v1584 = vshrl.u32 %v1583, 7
  %v1585 = vsub.s32 0, %v1584
  %v1586 = vrot.slane %v1581, %v1585
  %v1588 = vsel %vm1435, %v1561, %v1586
  %v1590 = vlaneseq
  %v1591 = vshrl.u32 %v1590, 7
  %v1592 = vsub.s32 0, %v1591
  %v1593 = vrot.slane %v1553, %v1592
  %v1595 = vsel %vm1437, %v1593, %v1588
  %v1597 = vlaneseq
  %v1598 = vshrl.u32 %v1597, 7
  %v1599 = vsub.s32 0, %v1598
  %v1600 = vrot.slane %v1551, %v1599
  %v1602 = vsel %vm510, %v1600, %v1595
  %v1603 = vld [vmem:[%s11] sm:$0xf]
  %vm1604 = vcmask 31744
  %v1606 = vsel %vm1604, %v1602, 0
  %vm1608 = vcmask 1043456
  %v1610 = vsel %vm1608, %v1603, 0
  %1612 = vmatprep.subr.mxu0 0.0
  %1613 = vmatpush1.msra.mxu0 %v1610
  %1614 = vmatprep.subr.mxu0 0.0
  %1615 = vmatpush1.msra.mxu0 0.0
  %1616 = vmatprep.subr.mxu0 0.0
  %1617 = vmatpush1.msra.mxu0 0.0
  %1618 = vmatprep.subr.mxu0 0.0
  %1619 = vmatpush1.msra.mxu0 0.0
  %1620 = vmatprep.subr.mxu0 0.0
  %1621 = vmatpush1.msra.mxu0 0.0
  %1622 = vmatprep.subr.mxu0 0.0
  %1623 = vmatpush1.msra.mxu0 0.0
  %1624 = vmatprep.subr.mxu0 0.0
  %1625 = vmatpush1.msra.mxu0 0.0
  %1626 = vmatprep.subr.mxu0 0.0
  %1627 = vmatpush1.msra.mxu0 0.0
  %1628 = vmatprep.subr.mxu0 0.0
  %1629 = vmatpush1.msra.mxu0 0.0
  %1630 = vmatprep.subr.mxu0 0.0
  %1631 = vmatpush1.msra.mxu0 0.0
  %1632 = vmatprep.subr.mxu0 0.0
  %1633 = vmatpush1.msra.mxu0 0.0
  %1634 = vmatprep.subr.mxu0 0.0
  %1635 = vmatpush1.msra.mxu0 0.0
  %1636 = vmatprep.subr.mxu0 0.0
  %1637 = vmatpush1.msra.mxu0 0.0
  %1638 = vmatprep.subr.mxu0 0.0
  %1639 = vmatpush1.msra.mxu0 0.0
  %1640 = vmatprep.subr.mxu0 0.0
  %1641 = vmatpush1.msra.mxu0 0.0
  %1642 = vmatprep.subr.mxu0 0.0
  %1643 = vmatpush1.msra.mxu0 0.0
  %1644 = vmatprep.subr.mxu0 0.0
  %1645 = vmatpush1.msra.mxu0 0.0
  %1646 = vmatprep.subr.mxu0 0.0
  %1647 = vmatpush1.msra.mxu0 0.0
  %1648 = vmatprep.subr.mxu0 0.0
  %1649 = vmatpush1.msra.mxu0 0.0
  %1650 = vmatprep.subr.mxu0 0.0
  %1651 = vmatpush1.msra.mxu0 0.0
  %1652 = vmatprep.subr.mxu0 0.0
  %1653 = vmatpush1.msra.mxu0 0.0
  %1654 = vmatprep.subr.mxu0 0.0
  %1655 = vmatpush1.msra.mxu0 0.0
  %1656 = vmatprep.subr.mxu0 0.0
  %1657 = vmatpush1.msra.mxu0 0.0
  %1658 = vmatprep.subr.mxu0 0.0
  %1659 = vmatpush1.msra.mxu0 0.0
  %1660 = vmatprep.subr.mxu0 0.0
  %1661 = vmatpush1.msra.mxu0 0.0
  %1662 = vmatprep.subr.mxu0 0.0
  %1663 = vmatpush1.msra.mxu0 0.0
  %1664 = vmatprep.subr.mxu0 0.0
  %1665 = vmatpush1.msra.mxu0 0.0
  %1666 = vmatprep.subr.mxu0 0.0
  %1667 = vmatpush1.msra.mxu0 0.0
  %1668 = vmatprep.subr.mxu0 0.0
  %1669 = vmatpush1.msra.mxu0 0.0
  %1670 = vmatprep.subr.mxu0 0.0
  %1671 = vmatpush1.msra.mxu0 0.0
  %1672 = vmatprep.subr.mxu0 0.0
  %1673 = vmatpush1.msra.mxu0 0.0
  %1674 = vmatprep.subr.mxu0 0.0
  %1675 = vmatpush1.msra.mxu0 0.0
  %1676 = vmatprep.mubr.f32.mxu0 0.0
  %1677 = vmatmul.mubr.f32.gmra.mrb[0].mxu0 %v1606
  %v1678 = vpop.f32.mrb[0].mxu0
  %v1679 = vadd.f32 0.0, %v1678
  %v1680 = vpop.f32.mrb[0].mxu0
  %1681 = vdwg.mxu0
  %v1682 = vlaneseq
  %v1683 = vshrl.u32 %v1682, 7
  %v1684 = vsub.s32 0, %v1683
  %v1685 = vrot.slane %v1679, %v1684
  %v1686 = vmul.f32 %v1292, %v1685
  %v1687 = vmul.f32 %v1295, %v1685
  %v1688 = vlaneseq
  %v1689 = vshrl.u32 %v1688, 7
  %v1690 = vsub.s32 1, %v1689
  %v1691 = vrot.slane %v1679, %v1690
  %v1692 = vadd.f32 %v1686, %v1691
  %v1693 = vadd.f32 %v1687, %v1691
  %v1694 = vlaneseq
  %v1695 = vshrl.u32 %v1694, 7
  %v1696 = vsub.s32 2, %v1695
  %v1697 = vrot.slane %v1679, %v1696
  %v1698 = vmul.f32 %v1397, %v1697
  %v1699 = vmul.f32 %v1400, %v1697
  %v1700 = vlaneseq
  %v1701 = vshrl.u32 %v1700, 7
  %v1702 = vsub.s32 3, %v1701
  %v1703 = vrot.slane %v1679, %v1702
  %v1704 = vadd.f32 %v1698, %v1703
  %v1705 = vadd.f32 %v1699, %v1703
  %v1706 = vadd.f32 %v1692, %v1704
  %v1707 = vadd.f32 %v1693, %v1705
  %v1708 = vmax.f32 %v1706, 0.0
  %v1709 = vmax.f32 %v1707, 0.0
  %1710 = vst [vmem:[%s12] sm:$0xff] %v1708
  %1711 = vst [vmem:[%s12 + $0x8] sm:$0xff] %v1709
  // Predicated region
  $region50: #{res_block_pallas.1} parent=0 // pred_check
    _
  $region51: #{res_block_pallas.1} parent=0 // pred_check_branch
    %1713 = sbr.rel (0) target = $region53
  $region52: #{res_block_pallas.1} parent=0 // pred_region
    _
  $region53: #{res_block_pallas.1} parent=0 // pred_fallthru
    _
  // Predicated region
  $region54: #{res_block_pallas.1} parent=0 // pred_check
    _
  $region55: #{res_block_pallas.1} parent=0 // pred_check_branch
    %1715 = sbr.rel (0) target = $region57
  $region56: #{res_block_pallas.1} parent=0 // pred_region
    _
  $region57: #{res_block_pallas.1} parent=0 // pred_fallthru
    _

</llo_original>
